<compile_context>
chip_gen: v7x
topology: tpu7x:2x2x1
jax: 0.10.0
libtpu: 0.0.40
codegen_flags: <defaults>
</compile_context>

<pallas_src>
import jax
import jax.numpy as jnp
from jax import lax
from jax.experimental import pallas as pl
from jax.experimental.pallas import tpu as pltpu

NUM_GROUPS = 32
EPS = 1e-6
_VMEM_LIMIT = 32 * 1024 * 1024  # explicit scoped-VMEM budget (safe on v5e/v6e/v7x)


# --------------------------------------------------------------------------
# Kernel 1: GroupNorm (full HW stats) + fused q/k/v projection, per batch.
# --------------------------------------------------------------------------
def _norm_qkv_kernel(x_ref, gsum_ref, gbcast_ref, gamma_ref, beta_ref,
                     wqkv_ref, bqkv_ref, q_ref, k_ref, v_ref):
    x = x_ref[...].astype(jnp.float32)                       # (HW, C)
    hw, c = x.shape
    inv_hw = 1.0 / float(hw)

    # GroupNorm(32, C, eps=1e-6): centered two-pass statistics, all fp32.
    ch_mean = jnp.sum(x, axis=0, keepdims=True) * inv_hw                              # (1, C)
    g_mean = jnp.dot(ch_mean, gsum_ref[...], preferred_element_type=jnp.float32)      # (1, G)
    mean = jnp.dot(g_mean, gbcast_ref[...], preferred_element_type=jnp.float32)       # (1, C)
    d = x - mean
    ch_var = jnp.sum(d * d, axis=0, keepdims=True) * inv_hw                           # (1, C)
    g_var = jnp.dot(ch_var, gsum_ref[...], preferred_element_type=jnp.float32)        # (1, G)
    var = jnp.dot(g_var, gbcast_ref[...], preferred_element_type=jnp.float32)         # (1, C)
    h = d * lax.rsqrt(var + EPS) * gamma_ref[...] + beta_ref[...]                     # (HW, C) f32

    # Fused q/k/v: one long-N MXU pass, bf16 operands, f32 accumulation.
    qkv = jnp.dot(h.astype(jnp.bfloat16), wqkv_ref[...],
                  preferred_element_type=jnp.float32) + bqkv_ref[...]                 # (HW, 3C)
    q_ref[...] = qkv[:, :c].astype(q_ref.dtype)
    k_ref[...] = qkv[:, c:2 * c].astype(k_ref.dtype)
    v_ref[...] = qkv[:, 2 * c:].astype(v_ref.dtype)


# --------------------------------------------------------------------------
# Kernel 2: flash-style attention (online softmax) + proj_out + residual.
# grid = (B, n_q_tiles, n_k_tiles); scratch accumulators carried over k-tiles.
# --------------------------------------------------------------------------
def _flash_attn_kernel(x_ref, q_ref, k_ref, v_ref, wp_ref, bp_ref, o_ref,
                       m_sc, l_sc, acc_sc):
    kt = pl.program_id(2)

    @pl.when(kt == 0)
    def _init():
        m_sc[...] = jnp.full_like(m_sc, -jnp.inf)
        l_sc[...] = jnp.zeros_like(l_sc)
        acc_sc[...] = jnp.zeros_like(acc_sc)

    q = q_ref[...]                                            # (tq, C) bf16
    k = k_ref[...]                                            # (tk, C) bf16
    c = q.shape[-1]

    # q @ k^T without materializing the transpose (contract channel axes).
    s = lax.dot_general(q, k, dimension_numbers=(((1,), (1,)), ((), ())),
                        preferred_element_type=jnp.float32)
    s = s * (float(c) ** -0.5)                                # (tq, tk) f32

    m_prev = m_sc[...]
    m_new = jnp.maximum(m_prev, jnp.max(s, axis=-1, keepdims=True))
    alpha = jnp.exp(m_prev - m_new)
    p = jnp.exp(s - m_new)
    l_sc[...] = alpha * l_sc[...] + jnp.sum(p, axis=-1, keepdims=True)
    acc_sc[...] = alpha * acc_sc[...] + jnp.dot(
        p.astype(jnp.bfloat16), v_ref[...], preferred_element_type=jnp.float32)
    m_sc[...] = m_new

    @pl.when(kt == pl.num_programs(2) - 1)
    def _finalize():
        attn = acc_sc[...] * pl.reciprocal(l_sc[...], approx=True)          # (tq, C) f32
        proj = jnp.dot(attn.astype(jnp.bfloat16), wp_ref[...],
                       preferred_element_type=jnp.float32) + bp_ref[...]
        # Residual: re-read x only here (keeps x out of live ranges during the loop).
        o_ref[...] = (x_ref[...].astype(jnp.float32) + proj).astype(o_ref.dtype)


# --------------------------------------------------------------------------
# Wrapper / plumbing
# --------------------------------------------------------------------------
def _group_matrices(c):
    """(C,G) sum-to-group-mean matrix and (G,C) broadcast-back matrix."""
    assert c % NUM_GROUPS == 0, "GroupNorm(32, C) requires C % 32 == 0"
    cg = c // NUM_GROUPS
    ch = jnp.arange(c)
    grp = jnp.arange(NUM_GROUPS)
    member = (ch[:, None] // cg) == grp[None, :]              # (C, G) bool
    gsum = member.astype(jnp.float32) / float(cg)             # channel-means -> group mean
    gbcast = member.T.astype(jnp.float32)                     # group -> every channel in it
    return gsum, gbcast


def _pick_tile(extent, cap):
    """Largest multiple of 8 dividing `extent` that is <= cap (else full extent)."""
    if extent <= cap:
        return extent
    t = cap - (cap % 8)
    while t >= 8:
        if extent % t == 0:
            return t
        t -= 8
    return extent


def _const_spec(shape, single_buffer):
    """BlockSpec for a grid-invariant (weight/bias) operand."""
    index_map = lambda *_: (0,) * len(shape)
    if single_buffer:
        return pl.BlockSpec(shape, index_map, pipeline_mode=pl.Buffered(buffer_count=1))
    return pl.BlockSpec(shape, index_map)


def _attn_block_impl(x_nchw, params, single_buffer_weights):
    b, c, h, w = x_nchw.shape
    hw = h * w
    x_seq = jnp.transpose(x_nchw.reshape(b, c, hw), (0, 2, 1))   # (B, HW, C)

    gsum, gbcast = _group_matrices(c)
    cs = lambda shape: _const_spec(shape, single_buffer_weights)

    # ---- pass 1: GroupNorm + fused q/k/v projection (per batch element) ----
    q, k, v = pl.pallas_call(
        _norm_qkv_kernel,
        out_shape=tuple(jax.ShapeDtypeStruct((b, hw, c), jnp.bfloat16) for _ in range(3)),
        grid=(b,),
        in_specs=[
            pl.BlockSpec((None, hw, c), lambda i: (i, 0, 0)),    # x
            cs((c, NUM_GROUPS)), cs((NUM_GROUPS, c)),            # group matrices
            cs((1, c)), cs((1, c)),                              # gamma, beta
            cs((c, 3 * c)), cs((1, 3 * c)),                      # fused Wqkv, bqkv
        ],
        out_specs=tuple(pl.BlockSpec((None, hw, c), lambda i: (i, 0, 0)) for _ in range(3)),
        compiler_params=pltpu.CompilerParams(
            dimension_semantics=("parallel",),
            vmem_limit_bytes=_VMEM_LIMIT),
    )(x_seq, gsum, gbcast, params["gamma"], params["beta"],
      params["wqkv_bf16"], params["bqkv"])

    # ---- pass 2: flash attention + proj_out + residual ----
    tq = _pick_tile(hw, 256)
    tk = _pick_tile(hw, 512)
    nqt, nkt = hw // tq, hw // tk

    out_seq = pl.pallas_call(
        _flash_attn_kernel,
        out_shape=jax.ShapeDtypeStruct((b, hw, c), x_nchw.dtype),
        grid=(b, nqt, nkt),
        in_specs=[
            pl.BlockSpec((None, tq, c), lambda i, qt, kt: (i, qt, 0)),   # x (residual)
            pl.BlockSpec((None, tq, c), lambda i, qt, kt: (i, qt, 0)),   # q tile
            pl.BlockSpec((None, tk, c), lambda i, qt, kt: (i, kt, 0)),   # k tile
            pl.BlockSpec((None, tk, c), lambda i, qt, kt: (i, kt, 0)),   # v tile
            cs((c, c)), cs((1, c)),                                      # Wproj, bproj
        ],
        out_specs=pl.BlockSpec((None, tq, c), lambda i, qt, kt: (i, qt, 0)),
        scratch_shapes=[
            pltpu.VMEM((tq, 1), jnp.float32),     # running max
            pltpu.VMEM((tq, 1), jnp.float32),     # running denom
            pltpu.VMEM((tq, c), jnp.float32),     # running numerator
        ],
        compiler_params=pltpu.CompilerParams(
            dimension_semantics=("parallel", "parallel", "arbitrary"),
            vmem_limit_bytes=_VMEM_LIMIT),
    )(x_seq, q, k, v, params["wp_bf16"], params["bp"])

    # (B, HW, C) -> NCHW
    return jnp.transpose(out_seq, (0, 2, 1)).reshape(b, c, h, w)


def attn_block(x_nchw, params):
    """x_nchw: (B, C, H, W) float32.  params: dict from init_params."""
    try:
        return _attn_block_impl(x_nchw, params, single_buffer_weights=True)
    except Exception:
        # pl.Buffered(1) unsupported on this jax/libtpu combo -> default
        # double-buffered weight BlockSpecs (correctness identical).
        return _attn_block_impl(x_nchw, params, single_buffer_weights=False)


def init_params(key, c):
    """Deterministic synthetic parameters matching AttnBlock.__init__ shapes."""
    assert c % NUM_GROUPS == 0, "GroupNorm(32, C) requires C % 32 == 0"
    keys = jax.random.split(key, 8)

    def conv_w(k):
        # Conv2d(C, C, 1) weight is (C_out, C_in, 1, 1); stored transposed (C_in, C_out).
        return jax.random.normal(k, (c, c), jnp.float32) * 0.05

    wq, wk, wv, wp = (conv_w(keys[i]) for i in range(4))
    bq = jax.random.normal(keys[4], (1, c), jnp.float32) * 0.01
    bk = jax.random.normal(keys[5], (1, c), jnp.float32) * 0.01
    bv = jax.random.normal(keys[6], (1, c), jnp.float32) * 0.01
    bp = jax.random.normal(keys[7], (1, c), jnp.float32) * 0.01

    return dict(
        gamma=jnp.ones((1, c), jnp.float32),
        beta=jnp.zeros((1, c), jnp.float32),
        wq=wq, wk=wk, wv=wv, wp=wp, bq=bq, bk=bk, bv=bv, bp=bp,
        # fused / kernel-dtype copies
        wqkv_bf16=jnp.concatenate([wq, wk, wv], axis=1).astype(jnp.bfloat16),
        bqkv=jnp.concatenate([bq, bk, bv], axis=1),
        wp_bf16=wp.astype(jnp.bfloat16),
    )


def attn_block_reference(x_nchw, params):
    """Pure-JAX fp32 reference mirroring the PyTorch forward, for validation."""
    b, c, h, w = x_nchw.shape
    hw = h * w
    cg = c // NUM_GROUPS
    xg = x_nchw.reshape(b, NUM_GROUPS, cg, h, w).astype(jnp.float32)
    mean = jnp.mean(xg, axis=(2, 3, 4), keepdims=True)
    var = jnp.mean((xg - mean) ** 2, axis=(2, 3, 4), keepdims=True)
    hn = ((xg - mean) / jnp.sqrt(var + EPS)).reshape(b, c, h, w)
    hn = hn * params["gamma"].reshape(1, c, 1, 1) + params["beta"].reshape(1, c, 1, 1)

    hs = jnp.transpose(hn.reshape(b, c, hw), (0, 2, 1))          # (B, HW, C)
    q = hs @ params["wq"] + params["bq"]
    k = hs @ params["wk"] + params["bk"]
    v = hs @ params["wv"] + params["bv"]
    wts = jnp.einsum("bqc,bkc->bqk", q, k) * (float(c) ** -0.5)
    wts = jax.nn.softmax(wts, axis=2)
    out = jnp.einsum("bqk,bkc->bqc", wts, v)
    out = out @ params["wp"] + params["bp"]
    out = jnp.transpose(out, (0, 2, 1)).reshape(b, c, h, w)
    return x_nchw + out


if __name__ == "__main__":
    # C must be a multiple of 32 (GroupNorm); 128 also keeps lanes fully dense.
    B, C, H, W = 2, 128, 8, 8
    key = jax.random.PRNGKey(0)
    kx, kp = jax.random.split(key)
    x = jax.random.normal(kx, (B, C, H, W), jnp.float32)
    params = init_params(kp, C)

    y = jax.block_until_ready(attn_block(x, params))
    y_ref = jax.block_until_ready(attn_block_reference(x, params))

    assert y.shape == (B, C, H, W)
    err = float(jnp.max(jnp.abs(y - y_ref)))
    # bf16 MXU operands (fp32 accumulation) vs fp32 reference -> bf16-sized tolerance.
    assert err < 3e-2, f"Pallas kernel mismatch vs reference: max abs err {err}"
    print("KERNEL_OK")
</pallas_src>

<mosaic_0001>
module attributes {stable_mosaic.version = 11 : i64} {
  func.func @_norm_qkv_kernel(%arg0: i32, %arg1: memref<1x64x128xf32, #tpu.memory_space<vmem>>, %arg2: memref<128x32xf32, #tpu.memory_space<vmem>>, %arg3: memref<32x128xf32, #tpu.memory_space<vmem>>, %arg4: memref<1x128xf32, #tpu.memory_space<vmem>>, %arg5: memref<1x128xf32, #tpu.memory_space<vmem>>, %arg6: memref<128x384xbf16, #tpu.memory_space<vmem>>, %arg7: memref<1x384xf32, #tpu.memory_space<vmem>>, %arg8: memref<1x64x128xbf16, #tpu.memory_space<vmem>>, %arg9: memref<1x64x128xbf16, #tpu.memory_space<vmem>>, %arg10: memref<1x64x128xbf16, #tpu.memory_space<vmem>>) attributes {dimension_semantics = [#tpu.dimension_semantics<parallel>], iteration_bounds = array<i64: 2>, scalar_prefetch = 0 : i64, scratch_operands = 0 : i64, tpu.core_type = #tpu.core_type<tc>, window_params = [{transform_indices = @transform_0, window_bounds = array<i64: 1, 64, 128>}, {pipeline_mode = #tpu.pipeline_mode<synchronous>, transform_indices = @transform_1, window_bounds = array<i64: 128, 32>}, {pipeline_mode = #tpu.pipeline_mode<synchronous>, transform_indices = @transform_2, window_bounds = array<i64: 32, 128>}, {pipeline_mode = #tpu.pipeline_mode<synchronous>, transform_indices = @transform_3, window_bounds = array<i64: 1, 128>}, {pipeline_mode = #tpu.pipeline_mode<synchronous>, transform_indices = @transform_4, window_bounds = array<i64: 1, 128>}, {pipeline_mode = #tpu.pipeline_mode<synchronous>, transform_indices = @transform_5, window_bounds = array<i64: 128, 384>}, {pipeline_mode = #tpu.pipeline_mode<synchronous>, transform_indices = @transform_6, window_bounds = array<i64: 1, 384>}, {transform_indices = @transform_7, window_bounds = array<i64: 1, 64, 128>}, {transform_indices = @transform_8, window_bounds = array<i64: 1, 64, 128>}, {transform_indices = @transform_9, window_bounds = array<i64: 1, 64, 128>}]} {
    %c0 = arith.constant 0 : index
    %c0_0 = arith.constant 0 : index
    %c0_1 = arith.constant 0 : index
    %0 = vector.load %arg1[%c0, %c0_0, %c0_1] : memref<1x64x128xf32, #tpu.memory_space<vmem>>, vector<1x64x128xf32>
    %1 = vector.shape_cast %0 : vector<1x64x128xf32> to vector<64x128xf32>
    %cst = arith.constant dense<0.000000e+00> : vector<128xf32>
    %2 = vector.multi_reduction <add>, %1, %cst [0] : vector<64x128xf32> to vector<128xf32>
    %3 = vector.shape_cast %2 : vector<128xf32> to vector<1x128xf32>
    %cst_2 = arith.constant 1.562500e-02 : f32
    %4 = vector.broadcast %cst_2 : f32 to vector<1x128xf32>
    %5 = arith.mulf %3, %4 : vector<1x128xf32>
    %c0_3 = arith.constant 0 : index
    %c0_4 = arith.constant 0 : index
    %6 = vector.load %arg2[%c0_3, %c0_4] : memref<128x32xf32, #tpu.memory_space<vmem>>, vector<128x32xf32>
    %cst_5 = arith.constant dense<0.000000e+00> : vector<1x32xf32>
    %7 = tpu.matmul %5, %6, %cst_5 {dimension_numbers = #tpu.dot_dimension_numbers<[1], [0], [0], [1], [0, 0, 1, 1], [], []>} : vector<1x128xf32>, vector<128x32xf32>, vector<1x32xf32> -> vector<1x32xf32>
    %c0_6 = arith.constant 0 : index
    %c0_7 = arith.constant 0 : index
    %8 = vector.load %arg3[%c0_6, %c0_7] : memref<32x128xf32, #tpu.memory_space<vmem>>, vector<32x128xf32>
    %cst_8 = arith.constant dense<0.000000e+00> : vector<1x128xf32>
    %9 = tpu.matmul %7, %8, %cst_8 {dimension_numbers = #tpu.dot_dimension_numbers<[1], [0], [0], [1], [0, 0, 1, 1], [], []>} : vector<1x32xf32>, vector<32x128xf32>, vector<1x128xf32> -> vector<1x128xf32>
    %10 = vector.broadcast %9 : vector<1x128xf32> to vector<64x128xf32>
    %11 = arith.subf %1, %10 : vector<64x128xf32>
    %12 = arith.mulf %11, %11 : vector<64x128xf32>
    %cst_9 = arith.constant dense<0.000000e+00> : vector<128xf32>
    %13 = vector.multi_reduction <add>, %12, %cst_9 [0] : vector<64x128xf32> to vector<128xf32>
    %14 = vector.shape_cast %13 : vector<128xf32> to vector<1x128xf32>
    %cst_10 = arith.constant 1.562500e-02 : f32
    %15 = vector.broadcast %cst_10 : f32 to vector<1x128xf32>
    %16 = arith.mulf %14, %15 : vector<1x128xf32>
    %c0_11 = arith.constant 0 : index
    %c0_12 = arith.constant 0 : index
    %17 = vector.load %arg2[%c0_11, %c0_12] : memref<128x32xf32, #tpu.memory_space<vmem>>, vector<128x32xf32>
    %cst_13 = arith.constant dense<0.000000e+00> : vector<1x32xf32>
    %18 = tpu.matmul %16, %17, %cst_13 {dimension_numbers = #tpu.dot_dimension_numbers<[1], [0], [0], [1], [0, 0, 1, 1], [], []>} : vector<1x128xf32>, vector<128x32xf32>, vector<1x32xf32> -> vector<1x32xf32>
    %c0_14 = arith.constant 0 : index
    %c0_15 = arith.constant 0 : index
    %19 = vector.load %arg3[%c0_14, %c0_15] : memref<32x128xf32, #tpu.memory_space<vmem>>, vector<32x128xf32>
    %cst_16 = arith.constant dense<0.000000e+00> : vector<1x128xf32>
    %20 = tpu.matmul %18, %19, %cst_16 {dimension_numbers = #tpu.dot_dimension_numbers<[1], [0], [0], [1], [0, 0, 1, 1], [], []>} : vector<1x32xf32>, vector<32x128xf32>, vector<1x128xf32> -> vector<1x128xf32>
    %cst_17 = arith.constant 9.99999997E-7 : f32
    %21 = vector.broadcast %cst_17 : f32 to vector<1x128xf32>
    %22 = arith.addf %20, %21 : vector<1x128xf32>
    %23 = math.rsqrt %22 : vector<1x128xf32>
    %24 = vector.broadcast %23 : vector<1x128xf32> to vector<64x128xf32>
    %25 = arith.mulf %11, %24 : vector<64x128xf32>
    %c0_18 = arith.constant 0 : index
    %c0_19 = arith.constant 0 : index
    %26 = vector.load %arg4[%c0_18, %c0_19] : memref<1x128xf32, #tpu.memory_space<vmem>>, vector<1x128xf32>
    %27 = vector.broadcast %26 : vector<1x128xf32> to vector<64x128xf32>
    %28 = arith.mulf %25, %27 : vector<64x128xf32>
    %c0_20 = arith.constant 0 : index
    %c0_21 = arith.constant 0 : index
    %29 = vector.load %arg5[%c0_20, %c0_21] : memref<1x128xf32, #tpu.memory_space<vmem>>, vector<1x128xf32>
    %30 = vector.broadcast %29 : vector<1x128xf32> to vector<64x128xf32>
    %31 = arith.addf %28, %30 : vector<64x128xf32>
    %32 = arith.truncf %31 : vector<64x128xf32> to vector<64x128xbf16>
    %c0_22 = arith.constant 0 : index
    %c0_23 = arith.constant 0 : index
    %33 = vector.load %arg6[%c0_22, %c0_23] : memref<128x384xbf16, #tpu.memory_space<vmem>>, vector<128x384xbf16>
    %cst_24 = arith.constant dense<0.000000e+00> : vector<64x384xf32>
    %34 = tpu.matmul %32, %33, %cst_24 {dimension_numbers = #tpu.dot_dimension_numbers<[1], [0], [0], [1], [0, 0, 1, 1], [], []>} : vector<64x128xbf16>, vector<128x384xbf16>, vector<64x384xf32> -> vector<64x384xf32>
    %c0_25 = arith.constant 0 : index
    %c0_26 = arith.constant 0 : index
    %35 = vector.load %arg7[%c0_25, %c0_26] : memref<1x384xf32, #tpu.memory_space<vmem>>, vector<1x384xf32>
    %36 = vector.broadcast %35 : vector<1x384xf32> to vector<64x384xf32>
    %37 = arith.addf %34, %36 : vector<64x384xf32>
    %38 = vector.extract_strided_slice %37 {offsets = [0, 0], sizes = [64, 128], strides = [1, 1]} : vector<64x384xf32> to vector<64x128xf32>
    %39 = arith.truncf %38 : vector<64x128xf32> to vector<64x128xbf16>
    %c0_27 = arith.constant 0 : index
    %c0_28 = arith.constant 0 : index
    %c0_29 = arith.constant 0 : index
    %40 = vector.load %arg8[%c0_27, %c0_28, %c0_29] : memref<1x64x128xbf16, #tpu.memory_space<vmem>>, vector<1x64x128xbf16>
    %41 = vector.shape_cast %40 : vector<1x64x128xbf16> to vector<64x128xbf16>
    %42 = vector.shape_cast %39 : vector<64x128xbf16> to vector<1x64x128xbf16>
    tpu.vector_store %arg8[%c0_27, %c0_28, %c0_29], %42 {strides = array<i32>} : memref<1x64x128xbf16, #tpu.memory_space<vmem>>, vector<1x64x128xbf16>,
    %43 = vector.extract_strided_slice %37 {offsets = [0, 128], sizes = [64, 128], strides = [1, 1]} : vector<64x384xf32> to vector<64x128xf32>
    %44 = arith.truncf %43 : vector<64x128xf32> to vector<64x128xbf16>
    %c0_30 = arith.constant 0 : index
    %c0_31 = arith.constant 0 : index
    %c0_32 = arith.constant 0 : index
    %45 = vector.load %arg9[%c0_30, %c0_31, %c0_32] : memref<1x64x128xbf16, #tpu.memory_space<vmem>>, vector<1x64x128xbf16>
    %46 = vector.shape_cast %45 : vector<1x64x128xbf16> to vector<64x128xbf16>
    %47 = vector.shape_cast %44 : vector<64x128xbf16> to vector<1x64x128xbf16>
    tpu.vector_store %arg9[%c0_30, %c0_31, %c0_32], %47 {strides = array<i32>} : memref<1x64x128xbf16, #tpu.memory_space<vmem>>, vector<1x64x128xbf16>,
    %48 = vector.extract_strided_slice %37 {offsets = [0, 256], sizes = [64, 128], strides = [1, 1]} : vector<64x384xf32> to vector<64x128xf32>
    %49 = arith.truncf %48 : vector<64x128xf32> to vector<64x128xbf16>
    %c0_33 = arith.constant 0 : index
    %c0_34 = arith.constant 0 : index
    %c0_35 = arith.constant 0 : index
    %50 = vector.load %arg10[%c0_33, %c0_34, %c0_35] : memref<1x64x128xbf16, #tpu.memory_space<vmem>>, vector<1x64x128xbf16>
    %51 = vector.shape_cast %50 : vector<1x64x128xbf16> to vector<64x128xbf16>
    %52 = vector.shape_cast %49 : vector<64x128xbf16> to vector<1x64x128xbf16>
    tpu.vector_store %arg10[%c0_33, %c0_34, %c0_35], %52 {strides = array<i32>} : memref<1x64x128xbf16, #tpu.memory_space<vmem>>, vector<1x64x128xbf16>,
    return
  }
  func.func @transform_0(%arg0: i32) -> (i32, i32, i32) {
    %c0_i32 = arith.constant 0 : i32
    %c0_i32_0 = arith.constant 0 : i32
    %c0_i32_1 = arith.constant 0 : i32
    return %arg0, %c0_i32, %c0_i32_0 : i32, i32, i32
  }
  func.func @transform_1(%arg0: i32) -> (i32, i32) {
    %c0_i32 = arith.constant 0 : i32
    %c0_i32_0 = arith.constant 0 : i32
    %c0_i32_1 = arith.constant 0 : i32
    return %c0_i32, %c0_i32_0 : i32, i32
  }
  func.func @transform_2(%arg0: i32) -> (i32, i32) {
    %c0_i32 = arith.constant 0 : i32
    %c0_i32_0 = arith.constant 0 : i32
    %c0_i32_1 = arith.constant 0 : i32
    return %c0_i32, %c0_i32_0 : i32, i32
  }
  func.func @transform_3(%arg0: i32) -> (i32, i32) {
    %c0_i32 = arith.constant 0 : i32
    %c0_i32_0 = arith.constant 0 : i32
    %c0_i32_1 = arith.constant 0 : i32
    return %c0_i32, %c0_i32_0 : i32, i32
  }
  func.func @transform_4(%arg0: i32) -> (i32, i32) {
    %c0_i32 = arith.constant 0 : i32
    %c0_i32_0 = arith.constant 0 : i32
    %c0_i32_1 = arith.constant 0 : i32
    return %c0_i32, %c0_i32_0 : i32, i32
  }
  func.func @transform_5(%arg0: i32) -> (i32, i32) {
    %c0_i32 = arith.constant 0 : i32
    %c0_i32_0 = arith.constant 0 : i32
    %c0_i32_1 = arith.constant 0 : i32
    return %c0_i32, %c0_i32_0 : i32, i32
  }
  func.func @transform_6(%arg0: i32) -> (i32, i32) {
    %c0_i32 = arith.constant 0 : i32
    %c0_i32_0 = arith.constant 0 : i32
    %c0_i32_1 = arith.constant 0 : i32
    return %c0_i32, %c0_i32_0 : i32, i32
  }
  func.func @transform_7(%arg0: i32) -> (i32, i32, i32) {
    %c0_i32 = arith.constant 0 : i32
    %c0_i32_0 = arith.constant 0 : i32
    %c0_i32_1 = arith.constant 0 : i32
    return %arg0, %c0_i32, %c0_i32_0 : i32, i32, i32
  }
  func.func @transform_8(%arg0: i32) -> (i32, i32, i32) {
    %c0_i32 = arith.constant 0 : i32
    %c0_i32_0 = arith.constant 0 : i32
    %c0_i32_1 = arith.constant 0 : i32
    return %arg0, %c0_i32, %c0_i32_0 : i32, i32, i32
  }
  func.func @transform_9(%arg0: i32) -> (i32, i32, i32) {
    %c0_i32 = arith.constant 0 : i32
    %c0_i32_0 = arith.constant 0 : i32
    %c0_i32_1 = arith.constant 0 : i32
    return %arg0, %c0_i32, %c0_i32_0 : i32, i32, i32
  }
}

module attributes {stable_mosaic.version = 11 : i64} {
  func.func @_norm_qkv_kernel(%arg0: i32, %arg1: memref<1x64x128xf32, #tpu.memory_space<vmem>>, %arg2: memref<128x32xf32, #tpu.memory_space<vmem>>, %arg3: memref<32x128xf32, #tpu.memory_space<vmem>>, %arg4: memref<1x128xf32, #tpu.memory_space<vmem>>, %arg5: memref<1x128xf32, #tpu.memory_space<vmem>>, %arg6: memref<128x384xbf16, #tpu.memory_space<vmem>>, %arg7: memref<1x384xf32, #tpu.memory_space<vmem>>, %arg8: memref<1x64x128xbf16, #tpu.memory_space<vmem>>, %arg9: memref<1x64x128xbf16, #tpu.memory_space<vmem>>, %arg10: memref<1x64x128xbf16, #tpu.memory_space<vmem>>) attributes {dimension_semantics = [#tpu.dimension_semantics<parallel>], iteration_bounds = array<i64: 2>, scalar_prefetch = 0 : i64, scratch_operands = 0 : i64, tpu.core_type = #tpu.core_type<tc>, window_params = [{transform_indices = @transform_0, window_bounds = array<i64: 1, 64, 128>}, {pipeline_mode = #tpu.pipeline_mode<synchronous>, transform_indices = @transform_1, window_bounds = array<i64: 128, 32>}, {pipeline_mode = #tpu.pipeline_mode<synchronous>, transform_indices = @transform_2, window_bounds = array<i64: 32, 128>}, {pipeline_mode = #tpu.pipeline_mode<synchronous>, transform_indices = @transform_3, window_bounds = array<i64: 1, 128>}, {pipeline_mode = #tpu.pipeline_mode<synchronous>, transform_indices = @transform_4, window_bounds = array<i64: 1, 128>}, {pipeline_mode = #tpu.pipeline_mode<synchronous>, transform_indices = @transform_5, window_bounds = array<i64: 128, 384>}, {pipeline_mode = #tpu.pipeline_mode<synchronous>, transform_indices = @transform_6, window_bounds = array<i64: 1, 384>}, {transform_indices = @transform_7, window_bounds = array<i64: 1, 64, 128>}, {transform_indices = @transform_8, window_bounds = array<i64: 1, 64, 128>}, {transform_indices = @transform_9, window_bounds = array<i64: 1, 64, 128>}]} {
    %c0 = arith.constant 0 : index
    %c0_0 = arith.constant 0 : index
    %c0_1 = arith.constant 0 : index
    %0 = vector.load %arg1[%c0, %c0_0, %c0_1] : memref<1x64x128xf32, #tpu.memory_space<vmem>>, vector<1x64x128xf32>
    %1 = vector.shape_cast %0 : vector<1x64x128xf32> to vector<64x128xf32>
    %cst = arith.constant dense<0.000000e+00> : vector<128xf32>
    %2 = vector.multi_reduction <add>, %1, %cst [0] : vector<64x128xf32> to vector<128xf32>
    %3 = vector.shape_cast %2 : vector<128xf32> to vector<1x128xf32>
    %cst_2 = arith.constant 1.562500e-02 : f32
    %4 = vector.broadcast %cst_2 : f32 to vector<1x128xf32>
    %5 = arith.mulf %3, %4 : vector<1x128xf32>
    %c0_3 = arith.constant 0 : index
    %c0_4 = arith.constant 0 : index
    %6 = vector.load %arg2[%c0_3, %c0_4] : memref<128x32xf32, #tpu.memory_space<vmem>>, vector<128x32xf32>
    %cst_5 = arith.constant dense<0.000000e+00> : vector<1x32xf32>
    %7 = tpu.matmul %5, %6, %cst_5 {dimension_numbers = #tpu.dot_dimension_numbers<[1], [0], [0], [1], [0, 0, 1, 1], [], []>} : vector<1x128xf32>, vector<128x32xf32>, vector<1x32xf32> -> vector<1x32xf32>
    %c0_6 = arith.constant 0 : index
    %c0_7 = arith.constant 0 : index
    %8 = vector.load %arg3[%c0_6, %c0_7] : memref<32x128xf32, #tpu.memory_space<vmem>>, vector<32x128xf32>
    %cst_8 = arith.constant dense<0.000000e+00> : vector<1x128xf32>
    %9 = tpu.matmul %7, %8, %cst_8 {dimension_numbers = #tpu.dot_dimension_numbers<[1], [0], [0], [1], [0, 0, 1, 1], [], []>} : vector<1x32xf32>, vector<32x128xf32>, vector<1x128xf32> -> vector<1x128xf32>
    %10 = vector.broadcast %9 : vector<1x128xf32> to vector<64x128xf32>
    %11 = arith.subf %1, %10 : vector<64x128xf32>
    %12 = arith.mulf %11, %11 : vector<64x128xf32>
    %cst_9 = arith.constant dense<0.000000e+00> : vector<128xf32>
    %13 = vector.multi_reduction <add>, %12, %cst_9 [0] : vector<64x128xf32> to vector<128xf32>
    %14 = vector.shape_cast %13 : vector<128xf32> to vector<1x128xf32>
    %cst_10 = arith.constant 1.562500e-02 : f32
    %15 = vector.broadcast %cst_10 : f32 to vector<1x128xf32>
    %16 = arith.mulf %14, %15 : vector<1x128xf32>
    %c0_11 = arith.constant 0 : index
    %c0_12 = arith.constant 0 : index
    %17 = vector.load %arg2[%c0_11, %c0_12] : memref<128x32xf32, #tpu.memory_space<vmem>>, vector<128x32xf32>
    %cst_13 = arith.constant dense<0.000000e+00> : vector<1x32xf32>
    %18 = tpu.matmul %16, %17, %cst_13 {dimension_numbers = #tpu.dot_dimension_numbers<[1], [0], [0], [1], [0, 0, 1, 1], [], []>} : vector<1x128xf32>, vector<128x32xf32>, vector<1x32xf32> -> vector<1x32xf32>
    %c0_14 = arith.constant 0 : index
    %c0_15 = arith.constant 0 : index
    %19 = vector.load %arg3[%c0_14, %c0_15] : memref<32x128xf32, #tpu.memory_space<vmem>>, vector<32x128xf32>
    %cst_16 = arith.constant dense<0.000000e+00> : vector<1x128xf32>
    %20 = tpu.matmul %18, %19, %cst_16 {dimension_numbers = #tpu.dot_dimension_numbers<[1], [0], [0], [1], [0, 0, 1, 1], [], []>} : vector<1x32xf32>, vector<32x128xf32>, vector<1x128xf32> -> vector<1x128xf32>
    %cst_17 = arith.constant 9.99999997E-7 : f32
    %21 = vector.broadcast %cst_17 : f32 to vector<1x128xf32>
    %22 = arith.addf %20, %21 : vector<1x128xf32>
    %23 = math.rsqrt %22 : vector<1x128xf32>
    %24 = vector.broadcast %23 : vector<1x128xf32> to vector<64x128xf32>
    %25 = arith.mulf %11, %24 : vector<64x128xf32>
    %c0_18 = arith.constant 0 : index
    %c0_19 = arith.constant 0 : index
    %26 = vector.load %arg4[%c0_18, %c0_19] : memref<1x128xf32, #tpu.memory_space<vmem>>, vector<1x128xf32>
    %27 = vector.broadcast %26 : vector<1x128xf32> to vector<64x128xf32>
    %28 = arith.mulf %25, %27 : vector<64x128xf32>
    %c0_20 = arith.constant 0 : index
    %c0_21 = arith.constant 0 : index
    %29 = vector.load %arg5[%c0_20, %c0_21] : memref<1x128xf32, #tpu.memory_space<vmem>>, vector<1x128xf32>
    %30 = vector.broadcast %29 : vector<1x128xf32> to vector<64x128xf32>
    %31 = arith.addf %28, %30 : vector<64x128xf32>
    %32 = arith.truncf %31 : vector<64x128xf32> to vector<64x128xbf16>
    %c0_22 = arith.constant 0 : index
    %c0_23 = arith.constant 0 : index
    %33 = vector.load %arg6[%c0_22, %c0_23] : memref<128x384xbf16, #tpu.memory_space<vmem>>, vector<128x384xbf16>
    %cst_24 = arith.constant dense<0.000000e+00> : vector<64x384xf32>
    %34 = tpu.matmul %32, %33, %cst_24 {dimension_numbers = #tpu.dot_dimension_numbers<[1], [0], [0], [1], [0, 0, 1, 1], [], []>} : vector<64x128xbf16>, vector<128x384xbf16>, vector<64x384xf32> -> vector<64x384xf32>
    %c0_25 = arith.constant 0 : index
    %c0_26 = arith.constant 0 : index
    %35 = vector.load %arg7[%c0_25, %c0_26] : memref<1x384xf32, #tpu.memory_space<vmem>>, vector<1x384xf32>
    %36 = vector.broadcast %35 : vector<1x384xf32> to vector<64x384xf32>
    %37 = arith.addf %34, %36 : vector<64x384xf32>
    %38 = vector.extract_strided_slice %37 {offsets = [0, 0], sizes = [64, 128], strides = [1, 1]} : vector<64x384xf32> to vector<64x128xf32>
    %39 = arith.truncf %38 : vector<64x128xf32> to vector<64x128xbf16>
    %c0_27 = arith.constant 0 : index
    %c0_28 = arith.constant 0 : index
    %c0_29 = arith.constant 0 : index
    %40 = vector.load %arg8[%c0_27, %c0_28, %c0_29] : memref<1x64x128xbf16, #tpu.memory_space<vmem>>, vector<1x64x128xbf16>
    %41 = vector.shape_cast %40 : vector<1x64x128xbf16> to vector<64x128xbf16>
    %42 = vector.shape_cast %39 : vector<64x128xbf16> to vector<1x64x128xbf16>
    tpu.vector_store %arg8[%c0_27, %c0_28, %c0_29], %42 {strides = array<i32>} : memref<1x64x128xbf16, #tpu.memory_space<vmem>>, vector<1x64x128xbf16>,
    %43 = vector.extract_strided_slice %37 {offsets = [0, 128], sizes = [64, 128], strides = [1, 1]} : vector<64x384xf32> to vector<64x128xf32>
    %44 = arith.truncf %43 : vector<64x128xf32> to vector<64x128xbf16>
    %c0_30 = arith.constant 0 : index
    %c0_31 = arith.constant 0 : index
    %c0_32 = arith.constant 0 : index
    %45 = vector.load %arg9[%c0_30, %c0_31, %c0_32] : memref<1x64x128xbf16, #tpu.memory_space<vmem>>, vector<1x64x128xbf16>
    %46 = vector.shape_cast %45 : vector<1x64x128xbf16> to vector<64x128xbf16>
    %47 = vector.shape_cast %44 : vector<64x128xbf16> to vector<1x64x128xbf16>
    tpu.vector_store %arg9[%c0_30, %c0_31, %c0_32], %47 {strides = array<i32>} : memref<1x64x128xbf16, #tpu.memory_space<vmem>>, vector<1x64x128xbf16>,
    %48 = vector.extract_strided_slice %37 {offsets = [0, 256], sizes = [64, 128], strides = [1, 1]} : vector<64x384xf32> to vector<64x128xf32>
    %49 = arith.truncf %48 : vector<64x128xf32> to vector<64x128xbf16>
    %c0_33 = arith.constant 0 : index
    %c0_34 = arith.constant 0 : index
    %c0_35 = arith.constant 0 : index
    %50 = vector.load %arg10[%c0_33, %c0_34, %c0_35] : memref<1x64x128xbf16, #tpu.memory_space<vmem>>, vector<1x64x128xbf16>
    %51 = vector.shape_cast %50 : vector<1x64x128xbf16> to vector<64x128xbf16>
    %52 = vector.shape_cast %49 : vector<64x128xbf16> to vector<1x64x128xbf16>
    tpu.vector_store %arg10[%c0_33, %c0_34, %c0_35], %52 {strides = array<i32>} : memref<1x64x128xbf16, #tpu.memory_space<vmem>>, vector<1x64x128xbf16>,
    return
  }
  func.func @transform_0(%arg0: i32) -> (i32, i32, i32) {
    %c0_i32 = arith.constant 0 : i32
    %c0_i32_0 = arith.constant 0 : i32
    %c0_i32_1 = arith.constant 0 : i32
    return %arg0, %c0_i32, %c0_i32_0 : i32, i32, i32
  }
  func.func @transform_1(%arg0: i32) -> (i32, i32) {
    %c0_i32 = arith.constant 0 : i32
    %c0_i32_0 = arith.constant 0 : i32
    %c0_i32_1 = arith.constant 0 : i32
    return %c0_i32, %c0_i32_0 : i32, i32
  }
  func.func @transform_2(%arg0: i32) -> (i32, i32) {
    %c0_i32 = arith.constant 0 : i32
    %c0_i32_0 = arith.constant 0 : i32
    %c0_i32_1 = arith.constant 0 : i32
    return %c0_i32, %c0_i32_0 : i32, i32
  }
  func.func @transform_3(%arg0: i32) -> (i32, i32) {
    %c0_i32 = arith.constant 0 : i32
    %c0_i32_0 = arith.constant 0 : i32
    %c0_i32_1 = arith.constant 0 : i32
    return %c0_i32, %c0_i32_0 : i32, i32
  }
  func.func @transform_4(%arg0: i32) -> (i32, i32) {
    %c0_i32 = arith.constant 0 : i32
    %c0_i32_0 = arith.constant 0 : i32
    %c0_i32_1 = arith.constant 0 : i32
    return %c0_i32, %c0_i32_0 : i32, i32
  }
  func.func @transform_5(%arg0: i32) -> (i32, i32) {
    %c0_i32 = arith.constant 0 : i32
    %c0_i32_0 = arith.constant 0 : i32
    %c0_i32_1 = arith.constant 0 : i32
    return %c0_i32, %c0_i32_0 : i32, i32
  }
  func.func @transform_6(%arg0: i32) -> (i32, i32) {
    %c0_i32 = arith.constant 0 : i32
    %c0_i32_0 = arith.constant 0 : i32
    %c0_i32_1 = arith.constant 0 : i32
    return %c0_i32, %c0_i32_0 : i32, i32
  }
  func.func @transform_7(%arg0: i32) -> (i32, i32, i32) {
    %c0_i32 = arith.constant 0 : i32
    %c0_i32_0 = arith.constant 0 : i32
    %c0_i32_1 = arith.constant 0 : i32
    return %arg0, %c0_i32, %c0_i32_0 : i32, i32, i32
  }
  func.func @transform_8(%arg0: i32) -> (i32, i32, i32) {
    %c0_i32 = arith.constant 0 : i32
    %c0_i32_0 = arith.constant 0 : i32
    %c0_i32_1 = arith.constant 0 : i32
    return %arg0, %c0_i32, %c0_i32_0 : i32, i32, i32
  }
  func.func @transform_9(%arg0: i32) -> (i32, i32, i32) {
    %c0_i32 = arith.constant 0 : i32
    %c0_i32_0 = arith.constant 0 : i32
    %c0_i32_1 = arith.constant 0 : i32
    return %arg0, %c0_i32, %c0_i32_0 : i32, i32, i32
  }
}

</mosaic_0001>

<llo_original>
// kernel: tpu_custom_call.1
$region0: #{tpu_custom_call.1}
  #allocation0 [shape = 'u32[]', space=smem, size = 0x4, offset = 0x4, fixed_abs, tag = 'smem constant byte address 0x4 - core index']
  #allocation1 [shape = 'u32[144,128]{1,0:T(1,128)}', space=vmem, size = 0x12000, scoped, tag = 'internal scratch']
  %s0 = inlined_call_operand.vmem [shape: f32[2,64,128], index: 0, kind: input, shape index: {}]
  %s1 = inlined_call_operand.vmem [shape: f32[128,32], index: 1, kind: input, shape index: {}]
  %s2 = inlined_call_operand.vmem [shape: f32[32,128], index: 2, kind: input, shape index: {}]
  %s3 = inlined_call_operand.vmem [shape: f32[1,128], index: 3, kind: input, shape index: {}]
  %s4 = inlined_call_operand.vmem [shape: f32[1,128], index: 4, kind: input, shape index: {}]
  %s5 = inlined_call_operand.hbm [shape: bf16[128,384], index: 5, kind: input, shape index: {}]
  %s6 = inlined_call_operand.vmem [shape: f32[1,384], index: 6, kind: input, shape index: {}]
  %s7 = inlined_call_operand.hbm [shape: bf16[2,64,128], index: 7, kind: output, shape index: {0}]
  %s8 = inlined_call_operand.hbm [shape: bf16[2,64,128], index: 8, kind: output, shape index: {1}]
  %s9 = inlined_call_operand.hbm [shape: bf16[2,64,128], index: 9, kind: output, shape index: {2}]
  %10 = xla_tuple %s7, %s8, %s9
  %s11 = sld [smem:[#allocation0]]
  $region81: #{tpu_custom_call.1} parent=0
    _
  %s13 = ssub.s32 1, %s11
  %s14 = scalar_select 0, %s13, %s11
  $region1: #{tpu_custom_call.1} parent=0
    #allocation2 [shape = 'u8[98304]{0}', space=vmem, size = 0x18000, scoped, tag = 'input window, operand 5, single buffered']
    #allocation3 [shape = 's32[2]{0}', space=sflag, size = 0x8, scoped, tag = 'scoped memory for tpu_custom_call.1']
    #allocation4 [shape = 's32[2]{0}', space=sflag, size = 0x8, scoped, tag = 'scoped memory for tpu_custom_call.1']
    #allocation5 [shape = 'u8[32768]{0}', space=vmem, size = 0x8000, scoped, tag = 'output window, operand 0']
    #allocation6 [shape = 'u8[32768]{0}', space=vmem, size = 0x8000, scoped, tag = 'output window, operand 1']
    #allocation7 [shape = 's32[2]{0}', space=sflag, size = 0x8, scoped, tag = 'scoped memory for tpu_custom_call.1']
    #allocation8 [shape = 'u8[32768]{0}', space=vmem, size = 0x8000, scoped, tag = 'output window, operand 2']
    %15 = vsyncpa [#allocation3], 0
    %16 = vsyncpa [#allocation4], 0
    %s17 = scalar_lea.sflag [#allocation4], 1
    %18 = vsyncpa %s17, 0
    %19 = vsyncpa [#allocation7], 0
    %s20 = scalar_lea.sflag [#allocation7], 1
    %21 = vsyncpa %s20, 0
    loop: start=0, step=1, limit=4
    $region2: #{tpu_custom_call.1} parent=1 // loop_pre_header
      _
    $region3: #{tpu_custom_call.1} parent=1 // loop_header
      %s23 = sphi 0, %s27
      %p24 = scmp.ge.s32.totalorder %s23, 4
      %s33 = sphi 0, %s35
      %s36 = sphi 0, %s33
      %s37 = sphi 0, %s36
      %s53 = sphi 0, %s37
      %s57 = sphi 0, %s57
      %s59 = sphi 0, %s57
      %s60 = sphi 0, %s59
      %s74 = sphi 0, %s60
      %s78 = sphi 0, %s78
      %s80 = sphi 0, %s78
      %s81 = sphi 0, %s80
      %s95 = sphi 0, %s81
      %s99 = sphi 0, %s99
      %s101 = sphi 0, %s99
      %s102 = sphi 0, %s101
      %s116 = sphi 0, %s102
      %s120 = sphi 0, %s120
      %s122 = sphi 0, %s120
      %s123 = sphi 0, %s122
      %s137 = sphi 0, %s123
      %s141 = sphi 0, %s141
      %s143 = sphi 0, %s141
      %s144 = sphi 0, %s143
      %s158 = sphi 0, %s144
      %s162 = sphi 0, %s162
      %s164 = sphi 0, %s162
      %s165 = sphi 0, %s164
      %s179 = sphi 0, %s165
      %s185 = sphi 0, %s187
      %s188 = sphi 0, %s185
      %s189 = sphi 0, %s188
      %s205 = sphi 0, %s189
      %s211 = sphi 0, %s213
      %s214 = sphi 0, %s211
      %s215 = sphi 0, %s214
      %s231 = sphi 0, %s215
      %s237 = sphi 0, %s239
      %s240 = sphi 0, %s237
      %s241 = sphi 0, %s240
      %s257 = sphi 0, %s241
    $region4: #{tpu_custom_call.1} parent=1 // loop_header_branch
      %26 = sbr.rel (%p24) target = $region8
    $region5: #{tpu_custom_call.1} parent=1 // loop_body
      %s28 = ssub.s32 %s23, 1
      %s29 = ssub.s32 %s23, 2
      %s30 = sadd.s32 %s23, 1
      %s31 = ssub.s32 %s23, %s30
      %p32 = scmp.eq.s32.totalorder %s31, 0
      %s34 = sadd.s32 %s33, 1
      %s35 = scalar_select %p32, %s33, %s34
      %p38 = pneg %p32
      %p39 = scmp.eq.s32.totalorder %s23, 1
      %p40 = por %p38, %p39
      %p41 = scmp.ne.s32.totalorder %s33, %s36
      %p42 = scmp.eq.s32.totalorder %s23, 0
      %p43 = por %p41, %p42
      %p44 = scmp.ne.s32.totalorder %s33, %s36
      %p45 = scmp.eq.s32.totalorder %s28, 1
      %p46 = por %p44, %p45
      %p47 = scmp.ne.s32.totalorder %s36, %s37
      %p48 = scmp.eq.s32.totalorder %s28, 0
      %p49 = por %p47, %p48
      %p50 = scmp.ne.s32.totalorder %s36, %s37
      %p51 = scmp.eq.s32.totalorder %s29, 1
      %p52 = por %p50, %p51
      %p54 = scmp.ne.s32.totalorder %s37, %s53
      %p55 = scmp.eq.s32.totalorder %s29, 0
      %p56 = por %p54, %p55
      %s58 = sadd.s32 %s57, 1
      %p61 = scmp.eq.s32.totalorder %s23, 1
      %p62 = scmp.ne.s32.totalorder %s57, %s59
      %p63 = scmp.eq.s32.totalorder %s23, 0
      %p64 = por %p62, %p63
      %p65 = scmp.ne.s32.totalorder %s57, %s59
      %p66 = scmp.eq.s32.totalorder %s28, 1
      %p67 = por %p65, %p66
      %p68 = scmp.ne.s32.totalorder %s59, %s60
      %p69 = scmp.eq.s32.totalorder %s28, 0
      %p70 = por %p68, %p69
      %p71 = scmp.ne.s32.totalorder %s59, %s60
      %p72 = scmp.eq.s32.totalorder %s29, 1
      %p73 = por %p71, %p72
      %p75 = scmp.ne.s32.totalorder %s60, %s74
      %p76 = scmp.eq.s32.totalorder %s29, 0
      %p77 = por %p75, %p76
      %s79 = sadd.s32 %s78, 1
      %p82 = scmp.eq.s32.totalorder %s23, 1
      %p83 = scmp.ne.s32.totalorder %s78, %s80
      %p84 = scmp.eq.s32.totalorder %s23, 0
      %p85 = por %p83, %p84
      %p86 = scmp.ne.s32.totalorder %s78, %s80
      %p87 = scmp.eq.s32.totalorder %s28, 1
      %p88 = por %p86, %p87
      %p89 = scmp.ne.s32.totalorder %s80, %s81
      %p90 = scmp.eq.s32.totalorder %s28, 0
      %p91 = por %p89, %p90
      %p92 = scmp.ne.s32.totalorder %s80, %s81
      %p93 = scmp.eq.s32.totalorder %s29, 1
      %p94 = por %p92, %p93
      %p96 = scmp.ne.s32.totalorder %s81, %s95
      %p97 = scmp.eq.s32.totalorder %s29, 0
      %p98 = por %p96, %p97
      %s100 = sadd.s32 %s99, 1
      %p103 = scmp.eq.s32.totalorder %s23, 1
      %p104 = scmp.ne.s32.totalorder %s99, %s101
      %p105 = scmp.eq.s32.totalorder %s23, 0
      %p106 = por %p104, %p105
      %p107 = scmp.ne.s32.totalorder %s99, %s101
      %p108 = scmp.eq.s32.totalorder %s28, 1
      %p109 = por %p107, %p108
      %p110 = scmp.ne.s32.totalorder %s101, %s102
      %p111 = scmp.eq.s32.totalorder %s28, 0
      %p112 = por %p110, %p111
      %p113 = scmp.ne.s32.totalorder %s101, %s102
      %p114 = scmp.eq.s32.totalorder %s29, 1
      %p115 = por %p113, %p114
      %p117 = scmp.ne.s32.totalorder %s102, %s116
      %p118 = scmp.eq.s32.totalorder %s29, 0
      %p119 = por %p117, %p118
      %s121 = sadd.s32 %s120, 1
      %p124 = scmp.eq.s32.totalorder %s23, 1
      %p125 = scmp.ne.s32.totalorder %s120, %s122
      %p126 = scmp.eq.s32.totalorder %s23, 0
      %p127 = por %p125, %p126
      %p128 = scmp.ne.s32.totalorder %s120, %s122
      %p129 = scmp.eq.s32.totalorder %s28, 1
      %p130 = por %p128, %p129
      %p131 = scmp.ne.s32.totalorder %s122, %s123
      %p132 = scmp.eq.s32.totalorder %s28, 0
      %p133 = por %p131, %p132
      %p134 = scmp.ne.s32.totalorder %s122, %s123
      %p135 = scmp.eq.s32.totalorder %s29, 1
      %p136 = por %p134, %p135
      %p138 = scmp.ne.s32.totalorder %s123, %s137
      %p139 = scmp.eq.s32.totalorder %s29, 0
      %p140 = por %p138, %p139
      %s142 = sadd.s32 %s141, 1
      %p145 = scmp.eq.s32.totalorder %s23, 1
      %p146 = scmp.ne.s32.totalorder %s141, %s143
      %p147 = scmp.eq.s32.totalorder %s23, 0
      %p148 = por %p146, %p147
      %p149 = scmp.ne.s32.totalorder %s141, %s143
      %p150 = scmp.eq.s32.totalorder %s28, 1
      %p151 = por %p149, %p150
      %p152 = scmp.ne.s32.totalorder %s143, %s144
      %p153 = scmp.eq.s32.totalorder %s28, 0
      %p154 = por %p152, %p153
      %p155 = scmp.ne.s32.totalorder %s143, %s144
      %p156 = scmp.eq.s32.totalorder %s29, 1
      %p157 = por %p155, %p156
      %p159 = scmp.ne.s32.totalorder %s144, %s158
      %p160 = scmp.eq.s32.totalorder %s29, 0
      %p161 = por %p159, %p160
      %s163 = sadd.s32 %s162, 1
      %p166 = scmp.eq.s32.totalorder %s23, 1
      %p167 = scmp.ne.s32.totalorder %s162, %s164
      %p168 = scmp.eq.s32.totalorder %s23, 0
      %p169 = por %p167, %p168
      %p170 = scmp.ne.s32.totalorder %s162, %s164
      %p171 = scmp.eq.s32.totalorder %s28, 1
      %p172 = por %p170, %p171
      %p173 = scmp.ne.s32.totalorder %s164, %s165
      %p174 = scmp.eq.s32.totalorder %s28, 0
      %p175 = por %p173, %p174
      %p176 = scmp.ne.s32.totalorder %s164, %s165
      %p177 = scmp.eq.s32.totalorder %s29, 1
      %p178 = por %p176, %p177
      %p180 = scmp.ne.s32.totalorder %s165, %s179
      %p181 = scmp.eq.s32.totalorder %s29, 0
      %p182 = por %p180, %p181
      %s183 = ssub.s32 %s23, %s30
      %p184 = scmp.eq.s32.totalorder %s183, 0
      %s186 = sadd.s32 %s185, 1
      %s187 = scalar_select %p184, %s185, %s186
      %p190 = pneg %p184
      %p191 = scmp.eq.s32.totalorder %s23, 1
      %p192 = por %p190, %p191
      %p193 = scmp.ne.s32.totalorder %s185, %s188
      %p194 = scmp.eq.s32.totalorder %s23, 0
      %p195 = por %p193, %p194
      %p196 = scmp.ne.s32.totalorder %s185, %s188
      %p197 = scmp.eq.s32.totalorder %s28, 1
      %p198 = por %p196, %p197
      %p199 = scmp.ne.s32.totalorder %s188, %s189
      %p200 = scmp.eq.s32.totalorder %s28, 0
      %p201 = por %p199, %p200
      %p202 = scmp.ne.s32.totalorder %s188, %s189
      %p203 = scmp.eq.s32.totalorder %s29, 1
      %p204 = por %p202, %p203
      %p206 = scmp.ne.s32.totalorder %s189, %s205
      %p207 = scmp.eq.s32.totalorder %s29, 0
      %p208 = por %p206, %p207
      %s209 = ssub.s32 %s23, %s30
      %p210 = scmp.eq.s32.totalorder %s209, 0
      %s212 = sadd.s32 %s211, 1
      %s213 = scalar_select %p210, %s211, %s212
      %p216 = pneg %p210
      %p217 = scmp.eq.s32.totalorder %s23, 1
      %p218 = por %p216, %p217
      %p219 = scmp.ne.s32.totalorder %s211, %s214
      %p220 = scmp.eq.s32.totalorder %s23, 0
      %p221 = por %p219, %p220
      %p222 = scmp.ne.s32.totalorder %s211, %s214
      %p223 = scmp.eq.s32.totalorder %s28, 1
      %p224 = por %p222, %p223
      %p225 = scmp.ne.s32.totalorder %s214, %s215
      %p226 = scmp.eq.s32.totalorder %s28, 0
      %p227 = por %p225, %p226
      %p228 = scmp.ne.s32.totalorder %s214, %s215
      %p229 = scmp.eq.s32.totalorder %s29, 1
      %p230 = por %p228, %p229
      %p232 = scmp.ne.s32.totalorder %s215, %s231
      %p233 = scmp.eq.s32.totalorder %s29, 0
      %p234 = por %p232, %p233
      %s235 = ssub.s32 %s23, %s30
      %p236 = scmp.eq.s32.totalorder %s235, 0
      %s238 = sadd.s32 %s237, 1
      %s239 = scalar_select %p236, %s237, %s238
      %p242 = pneg %p236
      %p243 = scmp.eq.s32.totalorder %s23, 1
      %p244 = por %p242, %p243
      %p245 = scmp.ne.s32.totalorder %s237, %s240
      %p246 = scmp.eq.s32.totalorder %s23, 0
      %p247 = por %p245, %p246
      %p248 = scmp.ne.s32.totalorder %s237, %s240
      %p249 = scmp.eq.s32.totalorder %s28, 1
      %p250 = por %p248, %p249
      %p251 = scmp.ne.s32.totalorder %s240, %s241
      %p252 = scmp.eq.s32.totalorder %s28, 0
      %p253 = por %p251, %p252
      %p254 = scmp.ne.s32.totalorder %s240, %s241
      %p255 = scmp.eq.s32.totalorder %s29, 1
      %p256 = por %p254, %p255
      %p258 = scmp.ne.s32.totalorder %s241, %s257
      %p259 = scmp.eq.s32.totalorder %s29, 0
      %p260 = por %p258, %p259
      %p261 = scmp.le.s32.totalorder 1, %s23
      %p262 = scmp.lt.s32.totalorder %s23, 3
      %p263 = pnand %p261, %p262
      %p264 = pneg %p263
      // Predicated region
      $region9: #{tpu_custom_call.1} parent=5 // pred_check
        _
      $region10: #{tpu_custom_call.1} parent=5 // pred_check_branch
        %266 = sbr.rel (%p263) target = $region12
      $region11: #{tpu_custom_call.1} parent=5 // pred_region
        %s267 = ssub.s32 %s23, 1
        // Predicated region
        $region13: #{tpu_custom_call.1} parent=11 // pred_check
          %p268 = pneg %p70
        $region14: #{tpu_custom_call.1} parent=11 // pred_check_branch
          %270 = sbr.rel (%p268) target = $region16
        $region15: #{tpu_custom_call.1} parent=11 // pred_region
          _
        $region16: #{tpu_custom_call.1} parent=11 // pred_fallthru
          _
        // Predicated region
        $region17: #{tpu_custom_call.1} parent=11 // pred_check
          %p271 = pneg %p91
        $region18: #{tpu_custom_call.1} parent=11 // pred_check_branch
          %273 = sbr.rel (%p271) target = $region20
        $region19: #{tpu_custom_call.1} parent=11 // pred_region
          _
        $region20: #{tpu_custom_call.1} parent=11 // pred_fallthru
          _
        // Predicated region
        $region21: #{tpu_custom_call.1} parent=11 // pred_check
          %p274 = pneg %p112
        $region22: #{tpu_custom_call.1} parent=11 // pred_check_branch
          %276 = sbr.rel (%p274) target = $region24
        $region23: #{tpu_custom_call.1} parent=11 // pred_region
          _
        $region24: #{tpu_custom_call.1} parent=11 // pred_fallthru
          _
        // Predicated region
        $region25: #{tpu_custom_call.1} parent=11 // pred_check
          %p277 = pneg %p133
        $region26: #{tpu_custom_call.1} parent=11 // pred_check_branch
          %279 = sbr.rel (%p277) target = $region28
        $region27: #{tpu_custom_call.1} parent=11 // pred_region
          _
        $region28: #{tpu_custom_call.1} parent=11 // pred_fallthru
          _
        // Predicated region
        $region29: #{tpu_custom_call.1} parent=11 // pred_check
          %p280 = pneg %p154
        $region30: #{tpu_custom_call.1} parent=11 // pred_check_branch
          %282 = sbr.rel (%p280) target = $region32
        $region31: #{tpu_custom_call.1} parent=11 // pred_region
          %s284 = ssub.s32 3072, 3072
          %285 = vsyncadd [#allocation3], %s284
          %s286 = sshll.u32 [#allocation2], 4
          %s287 = int_to_ptr.vmem [resolvable:$true] %s286
          %292 = dma.hbm_to_vmem [thread:$0]  %s5, 3072, %s287, [#allocation3], 192, 192, 12
        $region32: #{tpu_custom_call.1} parent=11 // pred_fallthru
          _
        // Predicated region
        $region33: #{tpu_custom_call.1} parent=11 // pred_check
          %p293 = pneg %p175
        $region34: #{tpu_custom_call.1} parent=11 // pred_check_branch
          %295 = sbr.rel (%p293) target = $region36
        $region35: #{tpu_custom_call.1} parent=11 // pred_region
          _
        $region36: #{tpu_custom_call.1} parent=11 // pred_fallthru
          _
      $region12: #{tpu_custom_call.1} parent=5 // pred_fallthru
        _
      %p296 = scmp.lt.s32.totalorder %s23, 2
      // Predicated region
      $region37: #{tpu_custom_call.1} parent=5 // pred_check
        %p297 = pneg %p296
      $region38: #{tpu_custom_call.1} parent=5 // pred_check_branch
        %299 = sbr.rel (%p297) target = $region40
      $region39: #{tpu_custom_call.1} parent=5 // pred_region
        // Predicated region
        $region41: #{tpu_custom_call.1} parent=39 // pred_check
          %p300 = pneg %p43
        $region42: #{tpu_custom_call.1} parent=39 // pred_check_branch
          %302 = sbr.rel (%p300) target = $region44
        $region43: #{tpu_custom_call.1} parent=39 // pred_region
          %p303 = scmp.lt.s32.totalorder %s23, 1
          %s304 = scalar_select %p303, %s23, 1
          %s305 = smul.addr %s304, 8
          %s306 = smul.addr %s305, 8
          %s307 = scalar_lea.vmem %s0, %s306
        $region44: #{tpu_custom_call.1} parent=39 // pred_fallthru
          _
      $region40: #{tpu_custom_call.1} parent=5 // pred_fallthru
        _
      %p308 = scmp.le.s32.totalorder 1, %s23
      %p309 = scmp.lt.s32.totalorder %s23, 3
      %p310 = pnand %p308, %p309
      %p311 = pneg %p310
      // Predicated region
      $region45: #{tpu_custom_call.1} parent=5 // pred_check
        _
      $region46: #{tpu_custom_call.1} parent=5 // pred_check_branch
        %313 = sbr.rel (%p310) target = $region48
      $region47: #{tpu_custom_call.1} parent=5 // pred_region
        %s314 = ssub.s32 %s23, 1
        // Predicated region
        $region49: #{tpu_custom_call.1} parent=47 // pred_check
          %p315 = pneg %p154
        $region50: #{tpu_custom_call.1} parent=47 // pred_check_branch
          %317 = sbr.rel (%p315) target = $region52
        $region51: #{tpu_custom_call.1} parent=47 // pred_region
          %318 = dma.done [#allocation3], 3072
        $region52: #{tpu_custom_call.1} parent=47 // pred_fallthru
          _
        %p319 = scmp.lt.s32.totalorder %s28, 1
        %s320 = scalar_select %p319, %s28, 1
        %s321 = smul.addr %s320, 8
        %s322 = smul.addr %s321, 8
        %s323 = scalar_lea.vmem %s0, %s322
        %p324 = pneg %p49
        %p325 = pneg %p46
        %p326 = pneg %p70
        %p327 = pneg %p67
        %p328 = pneg %p91
        %p329 = pneg %p88
        %p330 = pneg %p112
        %p331 = pneg %p109
        %p332 = pneg %p133
        %p333 = pneg %p130
        %p334 = pneg %p154
        %p335 = pneg %p151
        %p336 = pneg %p175
        %p337 = pneg %p172
        %p338 = pneg %p201
        %p339 = pneg %p198
        %s340 = sand.u32 %s188, 1
        %s341 = scalar_lea.sflag [#allocation4], %s340
        %s342 = sand.u32 %s188, 1
        %s343 = smul.addr %s342, 32
        %s344 = scalar_lea.vmem [#allocation5], %s343
        %p345 = pneg %p227
        %p346 = pneg %p224
        %s347 = sand.u32 %s28, 1
        %s348 = scalar_lea.sflag [#allocation7], %s347
        %s349 = sand.u32 %s214, 1
        %s350 = smul.addr %s349, 32
        %s351 = scalar_lea.vmem [#allocation6], %s350
        %p352 = pneg %p253
        %p353 = pneg %p250
        %s354 = sand.u32 %s28, 1
        %s355 = scalar_lea.sflag [#allocation7], %s354
        %s356 = sand.u32 %s240, 1
        %s357 = smul.addr %s356, 32
        %s358 = scalar_lea.vmem [#allocation8], %s357
        %p359 = scmp.lt.s32.totalorder %s28, 1
        %s360 = scalar_select %p359, %s28, 1
        %s361 = smul.addr %s360, 8
        %s362 = smul.addr %s361, 8
        %s363 = scalar_lea.vmem %s0, %s362
        %v365 = vld [vmem:[%s363] sm:$0xff]
        %v366 = vld [vmem:[%s363 + $0x8] sm:$0xff]
        %v367 = vld [vmem:[%s363 + $0x10] sm:$0xff]
        %v368 = vld [vmem:[%s363 + $0x18] sm:$0xff]
        %v369 = vld [vmem:[%s363 + $0x20] sm:$0xff]
        %v370 = vld [vmem:[%s363 + $0x28] sm:$0xff]
        %v371 = vld [vmem:[%s363 + $0x30] sm:$0xff]
        %v372 = vld [vmem:[%s363 + $0x38] sm:$0xff]
        %v373 = vadd.f32 %v365, %v366
        %v374 = vadd.f32 %v373, %v367
        %v375 = vadd.f32 %v374, %v368
        %v376 = vadd.f32 %v375, %v369
        %v377 = vadd.f32 %v376, %v370
        %v378 = vadd.f32 %v377, %v371
        %v379 = vadd.f32 %v378, %v372
        %v380 = vrot.slane %v379, 4
        %v381 = vadd.f32 %v379, %v380
        %v382 = vrot.slane %v381, 2
        %v383 = vadd.f32 %v381, %v382
        %v384 = vrot.slane %v383, 1
        %v385 = vadd.f32 %v383, %v384
        %v386 = vmul.f32 %v385, 0.015625
        %v387 = vld [vmem:[%s1] sm:$0xff]
        %v388 = vld [vmem:[%s1 + $0x8] sm:$0xff]
        %v389 = vld [vmem:[%s1 + $0x10] sm:$0xff]
        %v390 = vld [vmem:[%s1 + $0x18] sm:$0xff]
        %v391 = vld [vmem:[%s1 + $0x20] sm:$0xff]
        %v392 = vld [vmem:[%s1 + $0x28] sm:$0xff]
        %v393 = vld [vmem:[%s1 + $0x30] sm:$0xff]
        %v394 = vld [vmem:[%s1 + $0x38] sm:$0xff]
        %v395 = vld [vmem:[%s1 + $0x40] sm:$0xff]
        %v396 = vld [vmem:[%s1 + $0x48] sm:$0xff]
        %v397 = vld [vmem:[%s1 + $0x50] sm:$0xff]
        %v398 = vld [vmem:[%s1 + $0x58] sm:$0xff]
        %v399 = vld [vmem:[%s1 + $0x60] sm:$0xff]
        %v400 = vld [vmem:[%s1 + $0x68] sm:$0xff]
        %v401 = vld [vmem:[%s1 + $0x70] sm:$0xff]
        %v402 = vld [vmem:[%s1 + $0x78] sm:$0xff]
        %403 = vmatprep.subr.mxu0 0.0
        %404 = vmatpush1.msra.mxu0 %v387
        %405 = vmatprep.subr.mxu0 0.0
        %406 = vmatpush1.msra.mxu0 %v388
        %407 = vmatprep.subr.mxu0 0.0
        %408 = vmatpush1.msra.mxu0 %v389
        %409 = vmatprep.subr.mxu0 0.0
        %410 = vmatpush1.msra.mxu0 %v390
        %411 = vmatprep.subr.mxu0 0.0
        %412 = vmatpush1.msra.mxu0 %v391
        %413 = vmatprep.subr.mxu0 0.0
        %414 = vmatpush1.msra.mxu0 %v392
        %415 = vmatprep.subr.mxu0 0.0
        %416 = vmatpush1.msra.mxu0 %v393
        %417 = vmatprep.subr.mxu0 0.0
        %418 = vmatpush1.msra.mxu0 %v394
        %419 = vmatprep.subr.mxu0 0.0
        %420 = vmatpush1.msra.mxu0 %v395
        %421 = vmatprep.subr.mxu0 0.0
        %422 = vmatpush1.msra.mxu0 %v396
        %423 = vmatprep.subr.mxu0 0.0
        %424 = vmatpush1.msra.mxu0 %v397
        %425 = vmatprep.subr.mxu0 0.0
        %426 = vmatpush1.msra.mxu0 %v398
        %427 = vmatprep.subr.mxu0 0.0
        %428 = vmatpush1.msra.mxu0 %v399
        %429 = vmatprep.subr.mxu0 0.0
        %430 = vmatpush1.msra.mxu0 %v400
        %431 = vmatprep.subr.mxu0 0.0
        %432 = vmatpush1.msra.mxu0 %v401
        %433 = vmatprep.subr.mxu0 0.0
        %434 = vmatpush1.msra.mxu0 %v402
        %435 = vmatprep.subr.mxu0 0.0
        %436 = vmatpush1.msra.mxu0 0.0
        %437 = vmatprep.subr.mxu0 0.0
        %438 = vmatpush1.msra.mxu0 0.0
        %439 = vmatprep.subr.mxu0 0.0
        %440 = vmatpush1.msra.mxu0 0.0
        %441 = vmatprep.subr.mxu0 0.0
        %442 = vmatpush1.msra.mxu0 0.0
        %443 = vmatprep.subr.mxu0 0.0
        %444 = vmatpush1.msra.mxu0 0.0
        %445 = vmatprep.subr.mxu0 0.0
        %446 = vmatpush1.msra.mxu0 0.0
        %447 = vmatprep.subr.mxu0 0.0
        %448 = vmatpush1.msra.mxu0 0.0
        %449 = vmatprep.subr.mxu0 0.0
        %450 = vmatpush1.msra.mxu0 0.0
        %451 = vmatprep.subr.mxu0 0.0
        %452 = vmatpush1.msra.mxu0 0.0
        %453 = vmatprep.subr.mxu0 0.0
        %454 = vmatpush1.msra.mxu0 0.0
        %455 = vmatprep.subr.mxu0 0.0
        %456 = vmatpush1.msra.mxu0 0.0
        %457 = vmatprep.subr.mxu0 0.0
        %458 = vmatpush1.msra.mxu0 0.0
        %459 = vmatprep.subr.mxu0 0.0
        %460 = vmatpush1.msra.mxu0 0.0
        %461 = vmatprep.subr.mxu0 0.0
        %462 = vmatpush1.msra.mxu0 0.0
        %463 = vmatprep.subr.mxu0 0.0
        %464 = vmatpush1.msra.mxu0 0.0
        %465 = vmatprep.subr.mxu0 0.0
        %466 = vmatpush1.msra.mxu0 0.0
        %467 = vmatprep.mubr.f32.mxu0 0.0
        %468 = vmatmul.mubr.f32.gmra.mrb[0].mxu0 %v386
        %v469 = vpop.f32.mrb[0].mxu0
        %v470 = vadd.f32 0.0, %v469
        %v471 = vpop.f32.mrb[0].mxu0
        %472 = vdwg.mxu0
        %v473 = vld [vmem:[%s2] sm:$0xff]
        %v474 = vld [vmem:[%s2 + $0x8] sm:$0xff]
        %v475 = vld [vmem:[%s2 + $0x10] sm:$0xff]
        %v476 = vld [vmem:[%s2 + $0x18] sm:$0xff]
        %vm477 = vcmask 261120
        %v479 = vsel %vm477, %v470, 0
        %481 = vmatprep.subr.mxu0 0.0
        %482 = vmatpush1.msra.mxu0 %v473
        %483 = vmatprep.subr.mxu0 0.0
        %484 = vmatpush1.msra.mxu0 %v474
        %485 = vmatprep.subr.mxu0 0.0
        %486 = vmatpush1.msra.mxu0 %v475
        %487 = vmatprep.subr.mxu0 0.0
        %488 = vmatpush1.msra.mxu0 %v476
        %489 = vmatprep.subr.mxu0 0.0
        %490 = vmatpush1.msra.mxu0 0.0
        %491 = vmatprep.subr.mxu0 0.0
        %492 = vmatpush1.msra.mxu0 0.0
        %493 = vmatprep.subr.mxu0 0.0
        %494 = vmatpush1.msra.mxu0 0.0
        %495 = vmatprep.subr.mxu0 0.0
        %496 = vmatpush1.msra.mxu0 0.0
        %497 = vmatprep.subr.mxu0 0.0
        %498 = vmatpush1.msra.mxu0 0.0
        %499 = vmatprep.subr.mxu0 0.0
        %500 = vmatpush1.msra.mxu0 0.0
        %501 = vmatprep.subr.mxu0 0.0
        %502 = vmatpush1.msra.mxu0 0.0
        %503 = vmatprep.subr.mxu0 0.0
        %504 = vmatpush1.msra.mxu0 0.0
        %505 = vmatprep.subr.mxu0 0.0
        %506 = vmatpush1.msra.mxu0 0.0
        %507 = vmatprep.subr.mxu0 0.0
        %508 = vmatpush1.msra.mxu0 0.0
        %509 = vmatprep.subr.mxu0 0.0
        %510 = vmatpush1.msra.mxu0 0.0
        %511 = vmatprep.subr.mxu0 0.0
        %512 = vmatpush1.msra.mxu0 0.0
        %513 = vmatprep.subr.mxu0 0.0
        %514 = vmatpush1.msra.mxu0 0.0
        %515 = vmatprep.subr.mxu0 0.0
        %516 = vmatpush1.msra.mxu0 0.0
        %517 = vmatprep.subr.mxu0 0.0
        %518 = vmatpush1.msra.mxu0 0.0
        %519 = vmatprep.subr.mxu0 0.0
        %520 = vmatpush1.msra.mxu0 0.0
        %521 = vmatprep.subr.mxu0 0.0
        %522 = vmatpush1.msra.mxu0 0.0
        %523 = vmatprep.subr.mxu0 0.0
        %524 = vmatpush1.msra.mxu0 0.0
        %525 = vmatprep.subr.mxu0 0.0
        %526 = vmatpush1.msra.mxu0 0.0
        %527 = vmatprep.subr.mxu0 0.0
        %528 = vmatpush1.msra.mxu0 0.0
        %529 = vmatprep.subr.mxu0 0.0
        %530 = vmatpush1.msra.mxu0 0.0
        %531 = vmatprep.subr.mxu0 0.0
        %532 = vmatpush1.msra.mxu0 0.0
        %533 = vmatprep.subr.mxu0 0.0
        %534 = vmatpush1.msra.mxu0 0.0
        %535 = vmatprep.subr.mxu0 0.0
        %536 = vmatpush1.msra.mxu0 0.0
        %537 = vmatprep.subr.mxu0 0.0
        %538 = vmatpush1.msra.mxu0 0.0
        %539 = vmatprep.subr.mxu0 0.0
        %540 = vmatpush1.msra.mxu0 0.0
        %541 = vmatprep.subr.mxu0 0.0
        %542 = vmatpush1.msra.mxu0 0.0
        %543 = vmatprep.subr.mxu0 0.0
        %544 = vmatpush1.msra.mxu0 0.0
        %545 = vmatprep.mubr.f32.mxu0 0.0
        %546 = vmatmul.mubr.f32.gmra.mrb[0].mxu0 %v479
        %v547 = vpop.f32.mrb[0].mxu0
        %v548 = vadd.f32 0.0, %v547
        %v549 = vpop.f32.mrb[0].mxu0
        %550 = vdwg.mxu0
        %v551 = vlaneseq
        %v552 = vshrl.u32 %v551, 7
        %v553 = vsub.s32 0, %v552
        %v554 = vrot.slane %v548, %v553
        %v555 = vsub.f32 %v365, %v554
        %v556 = vsub.f32 %v366, %v554
        %v557 = vsub.f32 %v367, %v554
        %v558 = vsub.f32 %v368, %v554
        %v559 = vsub.f32 %v369, %v554
        %v560 = vsub.f32 %v370, %v554
        %v561 = vsub.f32 %v371, %v554
        %v562 = vsub.f32 %v372, %v554
        %v563 = vmul.f32 %v555, %v555
        %v564 = vmul.f32 %v556, %v556
        %v565 = vmul.f32 %v557, %v557
        %v566 = vmul.f32 %v558, %v558
        %v567 = vmul.f32 %v559, %v559
        %v568 = vmul.f32 %v560, %v560
        %v569 = vmul.f32 %v561, %v561
        %v570 = vmul.f32 %v562, %v562
        %v571 = vadd.f32 %v563, %v564
        %v572 = vadd.f32 %v571, %v565
        %v573 = vadd.f32 %v572, %v566
        %v574 = vadd.f32 %v573, %v567
        %v575 = vadd.f32 %v574, %v568
        %v576 = vadd.f32 %v575, %v569
        %v577 = vadd.f32 %v576, %v570
        %v578 = vrot.slane %v577, 4
        %v579 = vadd.f32 %v577, %v578
        %v580 = vrot.slane %v579, 2
        %v581 = vadd.f32 %v579, %v580
        %v582 = vrot.slane %v581, 1
        %v583 = vadd.f32 %v581, %v582
        %v584 = vmul.f32 %v583, 0.015625
        %585 = vmatprep.subr.mxu0 0.0
        %586 = vmatpush1.msra.mxu0 %v387
        %587 = vmatprep.subr.mxu0 0.0
        %588 = vmatpush1.msra.mxu0 %v388
        %589 = vmatprep.subr.mxu0 0.0
        %590 = vmatpush1.msra.mxu0 %v389
        %591 = vmatprep.subr.mxu0 0.0
        %592 = vmatpush1.msra.mxu0 %v390
        %593 = vmatprep.subr.mxu0 0.0
        %594 = vmatpush1.msra.mxu0 %v391
        %595 = vmatprep.subr.mxu0 0.0
        %596 = vmatpush1.msra.mxu0 %v392
        %597 = vmatprep.subr.mxu0 0.0
        %598 = vmatpush1.msra.mxu0 %v393
        %599 = vmatprep.subr.mxu0 0.0
        %600 = vmatpush1.msra.mxu0 %v394
        %601 = vmatprep.subr.mxu0 0.0
        %602 = vmatpush1.msra.mxu0 %v395
        %603 = vmatprep.subr.mxu0 0.0
        %604 = vmatpush1.msra.mxu0 %v396
        %605 = vmatprep.subr.mxu0 0.0
        %606 = vmatpush1.msra.mxu0 %v397
        %607 = vmatprep.subr.mxu0 0.0
        %608 = vmatpush1.msra.mxu0 %v398
        %609 = vmatprep.subr.mxu0 0.0
        %610 = vmatpush1.msra.mxu0 %v399
        %611 = vmatprep.subr.mxu0 0.0
        %612 = vmatpush1.msra.mxu0 %v400
        %613 = vmatprep.subr.mxu0 0.0
        %614 = vmatpush1.msra.mxu0 %v401
        %615 = vmatprep.subr.mxu0 0.0
        %616 = vmatpush1.msra.mxu0 %v402
        %617 = vmatprep.subr.mxu0 0.0
        %618 = vmatpush1.msra.mxu0 0.0
        %619 = vmatprep.subr.mxu0 0.0
        %620 = vmatpush1.msra.mxu0 0.0
        %621 = vmatprep.subr.mxu0 0.0
        %622 = vmatpush1.msra.mxu0 0.0
        %623 = vmatprep.subr.mxu0 0.0
        %624 = vmatpush1.msra.mxu0 0.0
        %625 = vmatprep.subr.mxu0 0.0
        %626 = vmatpush1.msra.mxu0 0.0
        %627 = vmatprep.subr.mxu0 0.0
        %628 = vmatpush1.msra.mxu0 0.0
        %629 = vmatprep.subr.mxu0 0.0
        %630 = vmatpush1.msra.mxu0 0.0
        %631 = vmatprep.subr.mxu0 0.0
        %632 = vmatpush1.msra.mxu0 0.0
        %633 = vmatprep.subr.mxu0 0.0
        %634 = vmatpush1.msra.mxu0 0.0
        %635 = vmatprep.subr.mxu0 0.0
        %636 = vmatpush1.msra.mxu0 0.0
        %637 = vmatprep.subr.mxu0 0.0
        %638 = vmatpush1.msra.mxu0 0.0
        %639 = vmatprep.subr.mxu0 0.0
        %640 = vmatpush1.msra.mxu0 0.0
        %641 = vmatprep.subr.mxu0 0.0
        %642 = vmatpush1.msra.mxu0 0.0
        %643 = vmatprep.subr.mxu0 0.0
        %644 = vmatpush1.msra.mxu0 0.0
        %645 = vmatprep.subr.mxu0 0.0
        %646 = vmatpush1.msra.mxu0 0.0
        %647 = vmatprep.subr.mxu0 0.0
        %648 = vmatpush1.msra.mxu0 0.0
        %649 = vmatprep.mubr.f32.mxu0 0.0
        %650 = vmatmul.mubr.f32.gmra.mrb[0].mxu0 %v584
        %v651 = vpop.f32.mrb[0].mxu0
        %v652 = vadd.f32 0.0, %v651
        %v653 = vpop.f32.mrb[0].mxu0
        %654 = vdwg.mxu0
        %v656 = vsel %vm477, %v652, 0
        %658 = vmatprep.subr.mxu0 0.0
        %659 = vmatpush1.msra.mxu0 %v473
        %660 = vmatprep.subr.mxu0 0.0
        %661 = vmatpush1.msra.mxu0 %v474
        %662 = vmatprep.subr.mxu0 0.0
        %663 = vmatpush1.msra.mxu0 %v475
        %664 = vmatprep.subr.mxu0 0.0
        %665 = vmatpush1.msra.mxu0 %v476
        %666 = vmatprep.subr.mxu0 0.0
        %667 = vmatpush1.msra.mxu0 0.0
        %668 = vmatprep.subr.mxu0 0.0
        %669 = vmatpush1.msra.mxu0 0.0
        %670 = vmatprep.subr.mxu0 0.0
        %671 = vmatpush1.msra.mxu0 0.0
        %672 = vmatprep.subr.mxu0 0.0
        %673 = vmatpush1.msra.mxu0 0.0
        %674 = vmatprep.subr.mxu0 0.0
        %675 = vmatpush1.msra.mxu0 0.0
        %676 = vmatprep.subr.mxu0 0.0
        %677 = vmatpush1.msra.mxu0 0.0
        %678 = vmatprep.subr.mxu0 0.0
        %679 = vmatpush1.msra.mxu0 0.0
        %680 = vmatprep.subr.mxu0 0.0
        %681 = vmatpush1.msra.mxu0 0.0
        %682 = vmatprep.subr.mxu0 0.0
        %683 = vmatpush1.msra.mxu0 0.0
        %684 = vmatprep.subr.mxu0 0.0
        %685 = vmatpush1.msra.mxu0 0.0
        %686 = vmatprep.subr.mxu0 0.0
        %687 = vmatpush1.msra.mxu0 0.0
        %688 = vmatprep.subr.mxu0 0.0
        %689 = vmatpush1.msra.mxu0 0.0
        %690 = vmatprep.subr.mxu0 0.0
        %691 = vmatpush1.msra.mxu0 0.0
        %692 = vmatprep.subr.mxu0 0.0
        %693 = vmatpush1.msra.mxu0 0.0
        %694 = vmatprep.subr.mxu0 0.0
        %695 = vmatpush1.msra.mxu0 0.0
        %696 = vmatprep.subr.mxu0 0.0
        %697 = vmatpush1.msra.mxu0 0.0
        %698 = vmatprep.subr.mxu0 0.0
        %699 = vmatpush1.msra.mxu0 0.0
        %700 = vmatprep.subr.mxu0 0.0
        %701 = vmatpush1.msra.mxu0 0.0
        %702 = vmatprep.subr.mxu0 0.0
        %703 = vmatpush1.msra.mxu0 0.0
        %704 = vmatprep.subr.mxu0 0.0
        %705 = vmatpush1.msra.mxu0 0.0
        %706 = vmatprep.subr.mxu0 0.0
        %707 = vmatpush1.msra.mxu0 0.0
        %708 = vmatprep.subr.mxu0 0.0
        %709 = vmatpush1.msra.mxu0 0.0
        %710 = vmatprep.subr.mxu0 0.0
        %711 = vmatpush1.msra.mxu0 0.0
        %712 = vmatprep.subr.mxu0 0.0
        %713 = vmatpush1.msra.mxu0 0.0
        %714 = vmatprep.subr.mxu0 0.0
        %715 = vmatpush1.msra.mxu0 0.0
        %716 = vmatprep.subr.mxu0 0.0
        %717 = vmatpush1.msra.mxu0 0.0
        %718 = vmatprep.subr.mxu0 0.0
        %719 = vmatpush1.msra.mxu0 0.0
        %720 = vmatprep.subr.mxu0 0.0
        %721 = vmatpush1.msra.mxu0 0.0
        %722 = vmatprep.mubr.f32.mxu0 0.0
        %723 = vmatmul.mubr.f32.gmra.mrb[0].mxu0 %v656
        %v724 = vpop.f32.mrb[0].mxu0
        %v725 = vadd.f32 1e-06, %v724
        %v726 = vpop.f32.mrb[0].mxu0
        %727 = vdwg.mxu0
        %v728 = vrsqrt.pop %v725
        %v729 = vlaneseq
        %v730 = vshrl.u32 %v729, 7
        %v731 = vsub.s32 0, %v730
        %v732 = vrot.slane %v728, %v731
        %v733 = vmul.f32 %v555, %v732
        %v734 = vmul.f32 %v556, %v732
        %v735 = vmul.f32 %v557, %v732
        %v736 = vmul.f32 %v558, %v732
        %v737 = vmul.f32 %v559, %v732
        %v738 = vmul.f32 %v560, %v732
        %v739 = vmul.f32 %v561, %v732
        %v740 = vmul.f32 %v562, %v732
        %v741 = vld [vmem:[%s3] sm:$0x1]
        %v743 = vlaneseq
        %v744 = vshrl.u32 %v743, 7
        %v745 = vsub.s32 0, %v744
        %v746 = vrot.slane %v741, %v745
        %v748 = vmul.f32 %v733, %v746
        %v749 = vmul.f32 %v734, %v746
        %v750 = vmul.f32 %v735, %v746
        %v751 = vmul.f32 %v736, %v746
        %v752 = vmul.f32 %v737, %v746
        %v753 = vmul.f32 %v738, %v746
        %v754 = vmul.f32 %v739, %v746
        %v755 = vmul.f32 %v740, %v746
        %v756 = vld [vmem:[%s4] sm:$0x1]
        %v758 = vlaneseq
        %v759 = vshrl.u32 %v758, 7
        %v760 = vsub.s32 0, %v759
        %v761 = vrot.slane %v756, %v760
        %v763 = vadd.f32 %v748, %v761
        %v764 = vadd.f32 %v749, %v761
        %v765 = vadd.f32 %v750, %v761
        %v766 = vadd.f32 %v751, %v761
        %v767 = vadd.f32 %v752, %v761
        %v768 = vadd.f32 %v753, %v761
        %v769 = vadd.f32 %v754, %v761
        %v770 = vadd.f32 %v755, %v761
        %v771 = vpack.c.bf16 %v764, %v763
        %v772 = vpack.c.bf16 %v766, %v765
        %v773 = vpack.c.bf16 %v768, %v767
        %v774 = vpack.c.bf16 %v770, %v769
        %v775 = vld [vmem:[#allocation2] sm:$0xff]
        %v776 = vld [vmem:[#allocation2 + $0x8] sm:$0xf]
        %v777 = vld [vmem:[#allocation2 + $0xc] sm:$0xff]
        %v778 = vld [vmem:[#allocation2 + $0x14] sm:$0xf]
        %v779 = vld [vmem:[#allocation2 + $0x18] sm:$0xff]
        %v780 = vld [vmem:[#allocation2 + $0x20] sm:$0xf]
        %v781 = vld [vmem:[#allocation2 + $0x24] sm:$0xff]
        %v782 = vld [vmem:[#allocation2 + $0x2c] sm:$0xf]
        %v783 = vld [vmem:[#allocation2 + $0x30] sm:$0xff]
        %v784 = vld [vmem:[#allocation2 + $0x38] sm:$0xf]
        %v785 = vld [vmem:[#allocation2 + $0x3c] sm:$0xff]
        %v786 = vld [vmem:[#allocation2 + $0x44] sm:$0xf]
        %v787 = vld [vmem:[#allocation2 + $0x48] sm:$0xff]
        %v788 = vld [vmem:[#allocation2 + $0x50] sm:$0xf]
        %v789 = vld [vmem:[#allocation2 + $0x54] sm:$0xff]
        %v790 = vld [vmem:[#allocation2 + $0x5c] sm:$0xf]
        %v791 = vld [vmem:[#allocation2 + $0x60] sm:$0xff]
        %v792 = vld [vmem:[#allocation2 + $0x68] sm:$0xf]
        %v793 = vld [vmem:[#allocation2 + $0x6c] sm:$0xff]
        %v794 = vld [vmem:[#allocation2 + $0x74] sm:$0xf]
        %v795 = vld [vmem:[#allocation2 + $0x78] sm:$0xff]
        %v796 = vld [vmem:[#allocation2 + $0x80] sm:$0xf]
        %v797 = vld [vmem:[#allocation2 + $0x84] sm:$0xff]
        %v798 = vld [vmem:[#allocation2 + $0x8c] sm:$0xf]
        %v799 = vld [vmem:[#allocation2 + $0x90] sm:$0xff]
        %v800 = vld [vmem:[#allocation2 + $0x98] sm:$0xf]
        %v801 = vld [vmem:[#allocation2 + $0x9c] sm:$0xff]
        %v802 = vld [vmem:[#allocation2 + $0xa4] sm:$0xf]
        %v803 = vld [vmem:[#allocation2 + $0xa8] sm:$0xff]
        %v804 = vld [vmem:[#allocation2 + $0xb0] sm:$0xf]
        %v805 = vld [vmem:[#allocation2 + $0xb4] sm:$0xff]
        %v806 = vld [vmem:[#allocation2 + $0xbc] sm:$0xf]
        %v807 = vld [vmem:[%s6] sm:$0x7]
        %v809 = vlaneseq
        %v810 = vshrl.u32 %v809, 7
        %v811 = vsub.s32 0, %v810
        %v812 = vrot.slane %v807, %v811
        %v813 = vlaneseq
        %v814 = vshrl.u32 %v813, 7
        %v815 = vsub.s32 1, %v814
        %v816 = vrot.slane %v807, %v815
        %v817 = vlaneseq
        %v818 = vshrl.u32 %v817, 7
        %v819 = vsub.s32 2, %v818
        %v820 = vrot.slane %v807, %v819
        %v856 = vunpack.c.l.b16 %v775
        %v857 = vunpack.c.h.b16 %v775
        %v858 = vunpack.c.l.b16 %v776
        %v859 = vunpack.c.l.b16 %v777
        %v860 = vunpack.c.h.b16 %v777
        %v861 = vunpack.c.l.b16 %v778
        %v862 = vunpack.c.l.b16 %v779
        %v863 = vunpack.c.h.b16 %v779
        %v864 = vunpack.c.l.b16 %v780
        %v865 = vunpack.c.l.b16 %v781
        %v866 = vunpack.c.h.b16 %v781
        %v867 = vunpack.c.l.b16 %v782
        %v868 = vunpack.c.l.b16 %v783
        %v869 = vunpack.c.h.b16 %v783
        %v870 = vunpack.c.l.b16 %v784
        %v871 = vunpack.c.l.b16 %v785
        %v872 = vunpack.c.h.b16 %v785
        %v873 = vunpack.c.l.b16 %v786
        %v874 = vunpack.c.l.b16 %v787
        %v875 = vunpack.c.h.b16 %v787
        %v876 = vunpack.c.l.b16 %v788
        %v877 = vunpack.c.l.b16 %v789
        %v878 = vunpack.c.h.b16 %v789
        %v879 = vunpack.c.l.b16 %v790
        %v880 = vunpack.c.l.b16 %v791
        %v881 = vunpack.c.h.b16 %v791
        %v882 = vunpack.c.l.b16 %v792
        %v883 = vunpack.c.l.b16 %v793
        %v884 = vunpack.c.h.b16 %v793
        %v885 = vunpack.c.l.b16 %v794
        %v886 = vunpack.c.l.b16 %v795
        %v887 = vunpack.c.h.b16 %v795
        %v888 = vunpack.c.l.b16 %v796
        %v889 = vunpack.c.l.b16 %v797
        %v890 = vunpack.c.h.b16 %v797
        %v891 = vunpack.c.l.b16 %v798
        %v892 = vunpack.c.l.b16 %v799
        %v893 = vunpack.c.h.b16 %v799
        %v894 = vunpack.c.l.b16 %v800
        %v895 = vunpack.c.l.b16 %v801
        %v896 = vunpack.c.h.b16 %v801
        %v897 = vunpack.c.l.b16 %v802
        %v898 = vunpack.c.l.b16 %v803
        %v899 = vunpack.c.h.b16 %v803
        %v900 = vunpack.c.l.b16 %v804
        %v901 = vunpack.c.l.b16 %v805
        %v902 = vunpack.c.h.b16 %v805
        %v903 = vunpack.c.l.b16 %v806
        %v904 = vpack.c.b16 %v859, %v856
        %v905 = vpack.c.b16 %v860, %v857
        %v906 = vpack.c.b16 %v861, %v858
        %v907 = vpack.c.b16 %v865, %v862
        %v908 = vpack.c.b16 %v866, %v863
        %v909 = vpack.c.b16 %v867, %v864
        %v910 = vpack.c.b16 %v871, %v868
        %v911 = vpack.c.b16 %v872, %v869
        %v912 = vpack.c.b16 %v873, %v870
        %v913 = vpack.c.b16 %v877, %v874
        %v914 = vpack.c.b16 %v878, %v875
        %v915 = vpack.c.b16 %v879, %v876
        %v916 = vpack.c.b16 %v883, %v880
        %v917 = vpack.c.b16 %v884, %v881
        %v918 = vpack.c.b16 %v885, %v882
        %v919 = vpack.c.b16 %v889, %v886
        %v920 = vpack.c.b16 %v890, %v887
        %v921 = vpack.c.b16 %v891, %v888
        %v922 = vpack.c.b16 %v895, %v892
        %v923 = vpack.c.b16 %v896, %v893
        %v924 = vpack.c.b16 %v897, %v894
        %v925 = vpack.c.b16 %v901, %v898
        %v926 = vpack.c.b16 %v902, %v899
        %v927 = vpack.c.b16 %v903, %v900
        %952 = vmatprep.subr.bf16.mxu0 %v905
        %953 = vmatpush1.bf16.msra.mxu0 %v904
        %954 = vmatprep.subr.bf16.mxu0 %v908
        %955 = vmatpush1.bf16.msra.mxu0 %v907
        %956 = vmatprep.subr.bf16.mxu0 %v911
        %957 = vmatpush1.bf16.msra.mxu0 %v910
        %958 = vmatprep.subr.bf16.mxu0 %v914
        %959 = vmatpush1.bf16.msra.mxu0 %v913
        %960 = vmatprep.subr.bf16.mxu0 %v917
        %961 = vmatpush1.bf16.msra.mxu0 %v916
        %962 = vmatprep.subr.bf16.mxu0 %v920
        %963 = vmatpush1.bf16.msra.mxu0 %v919
        %964 = vmatprep.subr.bf16.mxu0 %v923
        %965 = vmatpush1.bf16.msra.mxu0 %v922
        %966 = vmatprep.subr.bf16.mxu0 %v926
        %967 = vmatpush1.bf16.msra.mxu0 %v925
        %968 = vmatprep.subr.bf16.mxu0 0
        %969 = vmatpush1.bf16.msra.mxu0 0
        %970 = vmatprep.subr.bf16.mxu0 0
        %971 = vmatpush1.bf16.msra.mxu0 0
        %972 = vmatprep.subr.bf16.mxu0 0
        %973 = vmatpush1.bf16.msra.mxu0 0
        %974 = vmatprep.subr.bf16.mxu0 0
        %975 = vmatpush1.bf16.msra.mxu0 0
        %976 = vmatprep.subr.bf16.mxu0 0
        %977 = vmatpush1.bf16.msra.mxu0 0
        %978 = vmatprep.subr.bf16.mxu0 0
        %979 = vmatpush1.bf16.msra.mxu0 0
        %980 = vmatprep.subr.bf16.mxu0 0
        %981 = vmatpush1.bf16.msra.mxu0 0
        %982 = vmatprep.subr.bf16.mxu0 0
        %983 = vmatpush1.bf16.msra.mxu0 0
        %984 = vmatprep.mubr.bf16.mxu0 0
        %985 = vmatmul.mubr.bf16.gmra.mrb[0].mxu0 %v771
        %v986 = vpop.f32.mrb[0].mxu0
        %v987 = vadd.f32 %v812, %v986
        %v988 = vpop.f32.mrb[0].mxu0
        %v989 = vadd.f32 %v816, %v988
        %v990 = vpop.f32.mrb[0].mxu0
        %v991 = vadd.f32 %v812, %v990
        %v992 = vpop.f32.mrb[0].mxu0
        %v993 = vadd.f32 %v816, %v992
        %994 = vmatprep.mubr.bf16.mxu0 0
        %995 = vmatmul.mubr.bf16.gmra.mrb[0].mxu0 %v772
        %v996 = vpop.f32.mrb[0].mxu0
        %v997 = vadd.f32 %v812, %v996
        %v998 = vpop.f32.mrb[0].mxu0
        %v999 = vadd.f32 %v816, %v998
        %v1000 = vpop.f32.mrb[0].mxu0
        %v1001 = vadd.f32 %v812, %v1000
        %v1002 = vpop.f32.mrb[0].mxu0
        %v1003 = vadd.f32 %v816, %v1002
        %1004 = vmatprep.mubr.bf16.mxu0 0
        %1005 = vmatmul.mubr.bf16.gmra.mrb[0].mxu0 %v773
        %v1006 = vpop.f32.mrb[0].mxu0
        %v1007 = vadd.f32 %v812, %v1006
        %v1008 = vpop.f32.mrb[0].mxu0
        %v1009 = vadd.f32 %v816, %v1008
        %v1010 = vpop.f32.mrb[0].mxu0
        %v1011 = vadd.f32 %v812, %v1010
        %v1012 = vpop.f32.mrb[0].mxu0
        %v1013 = vadd.f32 %v816, %v1012
        %1014 = vmatprep.mubr.bf16.mxu0 0
        %1015 = vmatmul.mubr.bf16.gmra.mrb[0].mxu0 %v774
        %v1016 = vpop.f32.mrb[0].mxu0
        %v1017 = vadd.f32 %v812, %v1016
        %v1018 = vpop.f32.mrb[0].mxu0
        %v1019 = vadd.f32 %v816, %v1018
        %v1020 = vpop.f32.mrb[0].mxu0
        %v1021 = vadd.f32 %v812, %v1020
        %v1022 = vpop.f32.mrb[0].mxu0
        %v1023 = vadd.f32 %v816, %v1022
        %1024 = vdwg.mxu0
        %1025 = vmatprep.subr.bf16.mxu0 0
        %1026 = vmatpush1.bf16.msra.mxu0 %v906
        %1027 = vmatprep.subr.bf16.mxu0 0
        %1028 = vmatpush1.bf16.msra.mxu0 %v909
        %1029 = vmatprep.subr.bf16.mxu0 0
        %1030 = vmatpush1.bf16.msra.mxu0 %v912
        %1031 = vmatprep.subr.bf16.mxu0 0
        %1032 = vmatpush1.bf16.msra.mxu0 %v915
        %1033 = vmatprep.subr.bf16.mxu0 0
        %1034 = vmatpush1.bf16.msra.mxu0 %v918
        %1035 = vmatprep.subr.bf16.mxu0 0
        %1036 = vmatpush1.bf16.msra.mxu0 %v921
        %1037 = vmatprep.subr.bf16.mxu0 0
        %1038 = vmatpush1.bf16.msra.mxu0 %v924
        %1039 = vmatprep.subr.bf16.mxu0 0
        %1040 = vmatpush1.bf16.msra.mxu0 %v927
        %1041 = vmatprep.subr.bf16.mxu0 0
        %1042 = vmatpush1.bf16.msra.mxu0 0
        %1043 = vmatprep.subr.bf16.mxu0 0
        %1044 = vmatpush1.bf16.msra.mxu0 0
        %1045 = vmatprep.subr.bf16.mxu0 0
        %1046 = vmatpush1.bf16.msra.mxu0 0
        %1047 = vmatprep.subr.bf16.mxu0 0
        %1048 = vmatpush1.bf16.msra.mxu0 0
        %1049 = vmatprep.subr.bf16.mxu0 0
        %1050 = vmatpush1.bf16.msra.mxu0 0
        %1051 = vmatprep.subr.bf16.mxu0 0
        %1052 = vmatpush1.bf16.msra.mxu0 0
        %1053 = vmatprep.subr.bf16.mxu0 0
        %1054 = vmatpush1.bf16.msra.mxu0 0
        %1055 = vmatprep.subr.bf16.mxu0 0
        %1056 = vmatpush1.bf16.msra.mxu0 0
        %1057 = vmatprep.mubr.bf16.mxu0 0
        %1058 = vmatmul.mubr.bf16.gmra.mrb[0].mxu0 %v771
        %v1059 = vpop.f32.mrb[0].mxu0
        %v1060 = vadd.f32 %v820, %v1059
        %v1061 = vpop.f32.mrb[0].mxu0
        %v1062 = vpop.f32.mrb[0].mxu0
        %v1063 = vadd.f32 %v820, %v1062
        %v1064 = vpop.f32.mrb[0].mxu0
        %1065 = vmatprep.mubr.bf16.mxu0 0
        %1066 = vmatmul.mubr.bf16.gmra.mrb[0].mxu0 %v772
        %v1067 = vpop.f32.mrb[0].mxu0
        %v1068 = vadd.f32 %v820, %v1067
        %v1069 = vpop.f32.mrb[0].mxu0
        %v1070 = vpop.f32.mrb[0].mxu0
        %v1071 = vadd.f32 %v820, %v1070
        %v1072 = vpop.f32.mrb[0].mxu0
        %1073 = vmatprep.mubr.bf16.mxu0 0
        %1074 = vmatmul.mubr.bf16.gmra.mrb[0].mxu0 %v773
        %v1075 = vpop.f32.mrb[0].mxu0
        %v1076 = vadd.f32 %v820, %v1075
        %v1077 = vpop.f32.mrb[0].mxu0
        %v1078 = vpop.f32.mrb[0].mxu0
        %v1079 = vadd.f32 %v820, %v1078
        %v1080 = vpop.f32.mrb[0].mxu0
        %1081 = vmatprep.mubr.bf16.mxu0 0
        %1082 = vmatmul.mubr.bf16.gmra.mrb[0].mxu0 %v774
        %v1083 = vpop.f32.mrb[0].mxu0
        %v1084 = vadd.f32 %v820, %v1083
        %v1085 = vpop.f32.mrb[0].mxu0
        %v1086 = vpop.f32.mrb[0].mxu0
        %v1087 = vadd.f32 %v820, %v1086
        %v1088 = vpop.f32.mrb[0].mxu0
        %1089 = vdwg.mxu0
        %v1090 = vpack.c.bf16 %v991, %v987
        %v1091 = vpack.c.bf16 %v1001, %v997
        %v1092 = vpack.c.bf16 %v1011, %v1007
        %v1093 = vpack.c.bf16 %v1021, %v1017
        %v1098 = vunpack.c.l.b16 %v1090
        %v1099 = vunpack.c.h.b16 %v1090
        %v1100 = vunpack.c.l.b16 %v1091
        %v1101 = vunpack.c.h.b16 %v1091
        %v1102 = vunpack.c.l.b16 %v1092
        %v1103 = vunpack.c.h.b16 %v1092
        %v1104 = vunpack.c.l.b16 %v1093
        %v1105 = vunpack.c.h.b16 %v1093
        %v1106 = vpack.c.b16 %v1098, %v1098
        %v1107 = vpack.c.b16 %v1099, %v1099
        %v1108 = vpack.c.b16 %v1100, %v1100
        %v1109 = vpack.c.b16 %v1101, %v1101
        %v1110 = vpack.c.b16 %v1102, %v1102
        %v1111 = vpack.c.b16 %v1103, %v1103
        %v1112 = vpack.c.b16 %v1104, %v1104
        %v1113 = vpack.c.b16 %v1105, %v1105
        %1122 = vst [vmem:[%s344] sm:$0xf] %v1106
        %1123 = vst [vmem:[%s344 + $0x4] sm:$0xf] %v1107
        %1124 = vst [vmem:[%s344 + $0x8] sm:$0xf] %v1108
        %1125 = vst [vmem:[%s344 + $0xc] sm:$0xf] %v1109
        %1126 = vst [vmem:[%s344 + $0x10] sm:$0xf] %v1110
        %1127 = vst [vmem:[%s344 + $0x14] sm:$0xf] %v1111
        %1128 = vst [vmem:[%s344 + $0x18] sm:$0xf] %v1112
        %1129 = vst [vmem:[%s344 + $0x1c] sm:$0xf] %v1113
        %v1130 = vpack.c.bf16 %v993, %v989
        %v1131 = vpack.c.bf16 %v1003, %v999
        %v1132 = vpack.c.bf16 %v1013, %v1009
        %v1133 = vpack.c.bf16 %v1023, %v1019
        %v1138 = vunpack.c.l.b16 %v1130
        %v1139 = vunpack.c.h.b16 %v1130
        %v1140 = vunpack.c.l.b16 %v1131
        %v1141 = vunpack.c.h.b16 %v1131
        %v1142 = vunpack.c.l.b16 %v1132
        %v1143 = vunpack.c.h.b16 %v1132
        %v1144 = vunpack.c.l.b16 %v1133
        %v1145 = vunpack.c.h.b16 %v1133
        %v1146 = vpack.c.b16 %v1138, %v1138
        %v1147 = vpack.c.b16 %v1139, %v1139
        %v1148 = vpack.c.b16 %v1140, %v1140
        %v1149 = vpack.c.b16 %v1141, %v1141
        %v1150 = vpack.c.b16 %v1142, %v1142
        %v1151 = vpack.c.b16 %v1143, %v1143
        %v1152 = vpack.c.b16 %v1144, %v1144
        %v1153 = vpack.c.b16 %v1145, %v1145
        %1162 = vst [vmem:[%s351] sm:$0xf] %v1146
        %1163 = vst [vmem:[%s351 + $0x4] sm:$0xf] %v1147
        %1164 = vst [vmem:[%s351 + $0x8] sm:$0xf] %v1148
        %1165 = vst [vmem:[%s351 + $0xc] sm:$0xf] %v1149
        %1166 = vst [vmem:[%s351 + $0x10] sm:$0xf] %v1150
        %1167 = vst [vmem:[%s351 + $0x14] sm:$0xf] %v1151
        %1168 = vst [vmem:[%s351 + $0x18] sm:$0xf] %v1152
        %1169 = vst [vmem:[%s351 + $0x1c] sm:$0xf] %v1153
        %v1170 = vpack.c.bf16 %v1063, %v1060
        %v1171 = vpack.c.bf16 %v1071, %v1068
        %v1172 = vpack.c.bf16 %v1079, %v1076
        %v1173 = vpack.c.bf16 %v1087, %v1084
        %v1178 = vunpack.c.l.b16 %v1170
        %v1179 = vunpack.c.h.b16 %v1170
        %v1180 = vunpack.c.l.b16 %v1171
        %v1181 = vunpack.c.h.b16 %v1171
        %v1182 = vunpack.c.l.b16 %v1172
        %v1183 = vunpack.c.h.b16 %v1172
        %v1184 = vunpack.c.l.b16 %v1173
        %v1185 = vunpack.c.h.b16 %v1173
        %v1186 = vpack.c.b16 %v1178, %v1178
        %v1187 = vpack.c.b16 %v1179, %v1179
        %v1188 = vpack.c.b16 %v1180, %v1180
        %v1189 = vpack.c.b16 %v1181, %v1181
        %v1190 = vpack.c.b16 %v1182, %v1182
        %v1191 = vpack.c.b16 %v1183, %v1183
        %v1192 = vpack.c.b16 %v1184, %v1184
        %v1193 = vpack.c.b16 %v1185, %v1185
        %1202 = vst [vmem:[%s358] sm:$0xf] %v1186
        %1203 = vst [vmem:[%s358 + $0x4] sm:$0xf] %v1187
        %1204 = vst [vmem:[%s358 + $0x8] sm:$0xf] %v1188
        %1205 = vst [vmem:[%s358 + $0xc] sm:$0xf] %v1189
        %1206 = vst [vmem:[%s358 + $0x10] sm:$0xf] %v1190
        %1207 = vst [vmem:[%s358 + $0x14] sm:$0xf] %v1191
        %1208 = vst [vmem:[%s358 + $0x18] sm:$0xf] %v1192
        %1209 = vst [vmem:[%s358 + $0x1c] sm:$0xf] %v1193
        %s1210 = sand.u32 %s188, 1
        %s1211 = scalar_lea.sflag [#allocation4], %s1210
        %s1212 = sand.u32 %s188, 1
        %s1213 = smul.addr %s1212, 32
        %s1214 = scalar_lea.vmem [#allocation5], %s1213
        %s1215 = sand.u32 %s28, 1
        %s1216 = scalar_lea.sflag [#allocation7], %s1215
        %s1217 = sand.u32 %s214, 1
        %s1218 = smul.addr %s1217, 32
        %s1219 = scalar_lea.vmem [#allocation6], %s1218
        %s1220 = sand.u32 %s28, 1
        %s1221 = scalar_lea.sflag [#allocation7], %s1220
        %s1222 = sand.u32 %s240, 1
        %s1223 = smul.addr %s1222, 32
        %s1224 = scalar_lea.vmem [#allocation8], %s1223
        // Predicated region
        $region53: #{tpu_custom_call.1} parent=47 // pred_check
          %p1225 = pneg %p198
        $region54: #{tpu_custom_call.1} parent=47 // pred_check_branch
          %1227 = sbr.rel (%p1225) target = $region56
        $region55: #{tpu_custom_call.1} parent=47 // pred_region
          %s1229 = ssub.s32 512, 512
          %1230 = vsyncadd %s1211, %s1229
          %s1231 = smul.addr %s28, 8
          %s1232 = smul.addr %s1231, 64
          %s1233 = scalar_lea.hbm %s7, %s1232
          %s1234 = sshll.u32 %s1214, 4
          %s1235 = int_to_ptr.vmem [resolvable:$true] %s1234
          %1240 = dma.vmem_to_hbm [thread:$0]  %s1235, 512, %s1233, %s1211, 64, 64, 4
        $region56: #{tpu_custom_call.1} parent=47 // pred_fallthru
          _
        // Predicated region
        $region57: #{tpu_custom_call.1} parent=47 // pred_check
          %p1241 = pneg %p224
        $region58: #{tpu_custom_call.1} parent=47 // pred_check_branch
          %1243 = sbr.rel (%p1241) target = $region60
        $region59: #{tpu_custom_call.1} parent=47 // pred_region
          %s1245 = ssub.s32 512, 512
          %1246 = vsyncadd %s1216, %s1245
          %s1247 = smul.addr %s28, 8
          %s1248 = smul.addr %s1247, 64
          %s1249 = scalar_lea.hbm %s8, %s1248
          %s1250 = sshll.u32 %s1219, 4
          %s1251 = int_to_ptr.vmem [resolvable:$true] %s1250
          %1256 = dma.vmem_to_hbm [thread:$0]  %s1251, 512, %s1249, %s1216, 64, 64, 4
        $region60: #{tpu_custom_call.1} parent=47 // pred_fallthru
          _
        // Predicated region
        $region61: #{tpu_custom_call.1} parent=47 // pred_check
          %p1257 = pneg %p250
        $region62: #{tpu_custom_call.1} parent=47 // pred_check_branch
          %1259 = sbr.rel (%p1257) target = $region64
        $region63: #{tpu_custom_call.1} parent=47 // pred_region
          %s1261 = ssub.s32 512, 512
          %1262 = vsyncadd %s1221, %s1261
          %s1263 = smul.addr %s28, 8
          %s1264 = smul.addr %s1263, 64
          %s1265 = scalar_lea.hbm %s9, %s1264
          %s1266 = sshll.u32 %s1224, 4
          %s1267 = int_to_ptr.vmem [resolvable:$true] %s1266
          %1272 = dma.vmem_to_hbm [thread:$0]  %s1267, 512, %s1265, %s1221, 64, 64, 4
        $region64: #{tpu_custom_call.1} parent=47 // pred_fallthru
          _
      $region48: #{tpu_custom_call.1} parent=5 // pred_fallthru
        _
      %p1273 = scmp.le.s32.totalorder 2, %s23
      // Predicated region
      $region65: #{tpu_custom_call.1} parent=5 // pred_check
        %p1274 = pneg %p1273
      $region66: #{tpu_custom_call.1} parent=5 // pred_check_branch
        %1276 = sbr.rel (%p1274) target = $region68
      $region67: #{tpu_custom_call.1} parent=5 // pred_region
        %s1277 = ssub.s32 %s23, 2
        // Predicated region
        $region69: #{tpu_custom_call.1} parent=67 // pred_check
          %p1278 = pneg %p204
        $region70: #{tpu_custom_call.1} parent=67 // pred_check_branch
          %1280 = sbr.rel (%p1278) target = $region72
        $region71: #{tpu_custom_call.1} parent=67 // pred_region
          %s1281 = sand.u32 %s189, 1
          %s1282 = scalar_lea.sflag [#allocation4], %s1281
          %s1283 = sand.u32 %s189, 1
          %s1284 = smul.addr %s1283, 32
          %s1285 = scalar_lea.vmem [#allocation5], %s1284
          %1286 = dma.done %s1282, 512
        $region72: #{tpu_custom_call.1} parent=67 // pred_fallthru
          _
        // Predicated region
        $region73: #{tpu_custom_call.1} parent=67 // pred_check
          %p1287 = pneg %p230
        $region74: #{tpu_custom_call.1} parent=67 // pred_check_branch
          %1289 = sbr.rel (%p1287) target = $region76
        $region75: #{tpu_custom_call.1} parent=67 // pred_region
          %s1290 = sand.u32 %s29, 1
          %s1291 = scalar_lea.sflag [#allocation7], %s1290
          %s1292 = sand.u32 %s215, 1
          %s1293 = smul.addr %s1292, 32
          %s1294 = scalar_lea.vmem [#allocation6], %s1293
          %1295 = dma.done %s1291, 512
        $region76: #{tpu_custom_call.1} parent=67 // pred_fallthru
          _
        // Predicated region
        $region77: #{tpu_custom_call.1} parent=67 // pred_check
          %p1296 = pneg %p256
        $region78: #{tpu_custom_call.1} parent=67 // pred_check_branch
          %1298 = sbr.rel (%p1296) target = $region80
        $region79: #{tpu_custom_call.1} parent=67 // pred_region
          %s1299 = sand.u32 %s29, 1
          %s1300 = scalar_lea.sflag [#allocation7], %s1299
          %s1301 = sand.u32 %s241, 1
          %s1302 = smul.addr %s1301, 32
          %s1303 = scalar_lea.vmem [#allocation8], %s1302
          %1304 = dma.done %s1300, 512
        $region80: #{tpu_custom_call.1} parent=67 // pred_fallthru
          _
      $region68: #{tpu_custom_call.1} parent=5 // pred_fallthru
        _
    $region6: #{tpu_custom_call.1} parent=1 // loop_footer
      %s27 = sadd.s32 1, %s23
    $region7: #{tpu_custom_call.1} parent=1 // loop_footer_branch
      %22 = sbr.rel target = $region3
    $region8: #{tpu_custom_call.1} parent=1 // loop_exit
      _
    %1305 = vsyncpa [#allocation3], 1
    %s1306 = scalar_lea.sflag [#allocation3], 1
    %1307 = vsyncpa %s1306, 1
    %1308 = vsyncpa [#allocation4], 1
    %s1309 = scalar_lea.sflag [#allocation4], 1
    %1310 = vsyncpa %s1309, 1
    %1311 = vsyncpa [#allocation7], 1
    %s1312 = scalar_lea.sflag [#allocation7], 1
    %1313 = vsyncpa %s1312, 1

// kernel: tpu_custom_call.1
$region0: #{tpu_custom_call.1}
  #allocation0 [shape = 'u32[]', space=smem, size = 0x4, offset = 0x4, fixed_abs, tag = 'smem constant byte address 0x4 - core index']
  #allocation1 [shape = 'u32[144,128]{1,0:T(1,128)}', space=vmem, size = 0x12000, scoped, tag = 'internal scratch']
  %s0 = inlined_call_operand.vmem [shape: f32[2,64,128], index: 0, kind: input, shape index: {}]
  %s1 = inlined_call_operand.vmem [shape: f32[128,32], index: 1, kind: input, shape index: {}]
  %s2 = inlined_call_operand.vmem [shape: f32[32,128], index: 2, kind: input, shape index: {}]
  %s3 = inlined_call_operand.vmem [shape: f32[1,128], index: 3, kind: input, shape index: {}]
  %s4 = inlined_call_operand.vmem [shape: f32[1,128], index: 4, kind: input, shape index: {}]
  %s5 = inlined_call_operand.hbm [shape: bf16[128,384], index: 5, kind: input, shape index: {}]
  %s6 = inlined_call_operand.vmem [shape: f32[1,384], index: 6, kind: input, shape index: {}]
  %s7 = inlined_call_operand.hbm [shape: bf16[2,64,128], index: 7, kind: output, shape index: {0}]
  %s8 = inlined_call_operand.hbm [shape: bf16[2,64,128], index: 8, kind: output, shape index: {1}]
  %s9 = inlined_call_operand.hbm [shape: bf16[2,64,128], index: 9, kind: output, shape index: {2}]
  %10 = xla_tuple %s7, %s8, %s9
  %s11 = sld [smem:[#allocation0]]
  $region81: #{tpu_custom_call.1} parent=0
    _
  %s13 = ssub.s32 1, %s11
  %s14 = scalar_select 0, %s13, %s11
  $region1: #{tpu_custom_call.1} parent=0
    #allocation2 [shape = 'u8[98304]{0}', space=vmem, size = 0x18000, scoped, tag = 'input window, operand 5, single buffered']
    #allocation3 [shape = 's32[2]{0}', space=sflag, size = 0x8, scoped, tag = 'scoped memory for tpu_custom_call.1']
    #allocation4 [shape = 's32[2]{0}', space=sflag, size = 0x8, scoped, tag = 'scoped memory for tpu_custom_call.1']
    #allocation5 [shape = 'u8[32768]{0}', space=vmem, size = 0x8000, scoped, tag = 'output window, operand 0']
    #allocation6 [shape = 'u8[32768]{0}', space=vmem, size = 0x8000, scoped, tag = 'output window, operand 1']
    #allocation7 [shape = 's32[2]{0}', space=sflag, size = 0x8, scoped, tag = 'scoped memory for tpu_custom_call.1']
    #allocation8 [shape = 'u8[32768]{0}', space=vmem, size = 0x8000, scoped, tag = 'output window, operand 2']
    %15 = vsyncpa [#allocation3], 0
    %16 = vsyncpa [#allocation4], 0
    %s17 = scalar_lea.sflag [#allocation4], 1
    %18 = vsyncpa %s17, 0
    %19 = vsyncpa [#allocation7], 0
    %s20 = scalar_lea.sflag [#allocation7], 1
    %21 = vsyncpa %s20, 0
    loop: start=0, step=1, limit=4
    $region2: #{tpu_custom_call.1} parent=1 // loop_pre_header
      _
    $region3: #{tpu_custom_call.1} parent=1 // loop_header
      %s23 = sphi 0, %s27
      %p24 = scmp.ge.s32.totalorder %s23, 4
      %s33 = sphi 0, %s35
      %s36 = sphi 0, %s33
      %s37 = sphi 0, %s36
      %s53 = sphi 0, %s37
      %s57 = sphi 0, %s57
      %s59 = sphi 0, %s57
      %s60 = sphi 0, %s59
      %s74 = sphi 0, %s60
      %s78 = sphi 0, %s78
      %s80 = sphi 0, %s78
      %s81 = sphi 0, %s80
      %s95 = sphi 0, %s81
      %s99 = sphi 0, %s99
      %s101 = sphi 0, %s99
      %s102 = sphi 0, %s101
      %s116 = sphi 0, %s102
      %s120 = sphi 0, %s120
      %s122 = sphi 0, %s120
      %s123 = sphi 0, %s122
      %s137 = sphi 0, %s123
      %s141 = sphi 0, %s141
      %s143 = sphi 0, %s141
      %s144 = sphi 0, %s143
      %s158 = sphi 0, %s144
      %s162 = sphi 0, %s162
      %s164 = sphi 0, %s162
      %s165 = sphi 0, %s164
      %s179 = sphi 0, %s165
      %s185 = sphi 0, %s187
      %s188 = sphi 0, %s185
      %s189 = sphi 0, %s188
      %s205 = sphi 0, %s189
      %s211 = sphi 0, %s213
      %s214 = sphi 0, %s211
      %s215 = sphi 0, %s214
      %s231 = sphi 0, %s215
      %s237 = sphi 0, %s239
      %s240 = sphi 0, %s237
      %s241 = sphi 0, %s240
      %s257 = sphi 0, %s241
    $region4: #{tpu_custom_call.1} parent=1 // loop_header_branch
      %26 = sbr.rel (%p24) target = $region8
    $region5: #{tpu_custom_call.1} parent=1 // loop_body
      %s28 = ssub.s32 %s23, 1
      %s29 = ssub.s32 %s23, 2
      %s30 = sadd.s32 %s23, 1
      %s31 = ssub.s32 %s23, %s30
      %p32 = scmp.eq.s32.totalorder %s31, 0
      %s34 = sadd.s32 %s33, 1
      %s35 = scalar_select %p32, %s33, %s34
      %p38 = pneg %p32
      %p39 = scmp.eq.s32.totalorder %s23, 1
      %p40 = por %p38, %p39
      %p41 = scmp.ne.s32.totalorder %s33, %s36
      %p42 = scmp.eq.s32.totalorder %s23, 0
      %p43 = por %p41, %p42
      %p44 = scmp.ne.s32.totalorder %s33, %s36
      %p45 = scmp.eq.s32.totalorder %s28, 1
      %p46 = por %p44, %p45
      %p47 = scmp.ne.s32.totalorder %s36, %s37
      %p48 = scmp.eq.s32.totalorder %s28, 0
      %p49 = por %p47, %p48
      %p50 = scmp.ne.s32.totalorder %s36, %s37
      %p51 = scmp.eq.s32.totalorder %s29, 1
      %p52 = por %p50, %p51
      %p54 = scmp.ne.s32.totalorder %s37, %s53
      %p55 = scmp.eq.s32.totalorder %s29, 0
      %p56 = por %p54, %p55
      %s58 = sadd.s32 %s57, 1
      %p61 = scmp.eq.s32.totalorder %s23, 1
      %p62 = scmp.ne.s32.totalorder %s57, %s59
      %p63 = scmp.eq.s32.totalorder %s23, 0
      %p64 = por %p62, %p63
      %p65 = scmp.ne.s32.totalorder %s57, %s59
      %p66 = scmp.eq.s32.totalorder %s28, 1
      %p67 = por %p65, %p66
      %p68 = scmp.ne.s32.totalorder %s59, %s60
      %p69 = scmp.eq.s32.totalorder %s28, 0
      %p70 = por %p68, %p69
      %p71 = scmp.ne.s32.totalorder %s59, %s60
      %p72 = scmp.eq.s32.totalorder %s29, 1
      %p73 = por %p71, %p72
      %p75 = scmp.ne.s32.totalorder %s60, %s74
      %p76 = scmp.eq.s32.totalorder %s29, 0
      %p77 = por %p75, %p76
      %s79 = sadd.s32 %s78, 1
      %p82 = scmp.eq.s32.totalorder %s23, 1
      %p83 = scmp.ne.s32.totalorder %s78, %s80
      %p84 = scmp.eq.s32.totalorder %s23, 0
      %p85 = por %p83, %p84
      %p86 = scmp.ne.s32.totalorder %s78, %s80
      %p87 = scmp.eq.s32.totalorder %s28, 1
      %p88 = por %p86, %p87
      %p89 = scmp.ne.s32.totalorder %s80, %s81
      %p90 = scmp.eq.s32.totalorder %s28, 0
      %p91 = por %p89, %p90
      %p92 = scmp.ne.s32.totalorder %s80, %s81
      %p93 = scmp.eq.s32.totalorder %s29, 1
      %p94 = por %p92, %p93
      %p96 = scmp.ne.s32.totalorder %s81, %s95
      %p97 = scmp.eq.s32.totalorder %s29, 0
      %p98 = por %p96, %p97
      %s100 = sadd.s32 %s99, 1
      %p103 = scmp.eq.s32.totalorder %s23, 1
      %p104 = scmp.ne.s32.totalorder %s99, %s101
      %p105 = scmp.eq.s32.totalorder %s23, 0
      %p106 = por %p104, %p105
      %p107 = scmp.ne.s32.totalorder %s99, %s101
      %p108 = scmp.eq.s32.totalorder %s28, 1
      %p109 = por %p107, %p108
      %p110 = scmp.ne.s32.totalorder %s101, %s102
      %p111 = scmp.eq.s32.totalorder %s28, 0
      %p112 = por %p110, %p111
      %p113 = scmp.ne.s32.totalorder %s101, %s102
      %p114 = scmp.eq.s32.totalorder %s29, 1
      %p115 = por %p113, %p114
      %p117 = scmp.ne.s32.totalorder %s102, %s116
      %p118 = scmp.eq.s32.totalorder %s29, 0
      %p119 = por %p117, %p118
      %s121 = sadd.s32 %s120, 1
      %p124 = scmp.eq.s32.totalorder %s23, 1
      %p125 = scmp.ne.s32.totalorder %s120, %s122
      %p126 = scmp.eq.s32.totalorder %s23, 0
      %p127 = por %p125, %p126
      %p128 = scmp.ne.s32.totalorder %s120, %s122
      %p129 = scmp.eq.s32.totalorder %s28, 1
      %p130 = por %p128, %p129
      %p131 = scmp.ne.s32.totalorder %s122, %s123
      %p132 = scmp.eq.s32.totalorder %s28, 0
      %p133 = por %p131, %p132
      %p134 = scmp.ne.s32.totalorder %s122, %s123
      %p135 = scmp.eq.s32.totalorder %s29, 1
      %p136 = por %p134, %p135
      %p138 = scmp.ne.s32.totalorder %s123, %s137
      %p139 = scmp.eq.s32.totalorder %s29, 0
      %p140 = por %p138, %p139
      %s142 = sadd.s32 %s141, 1
      %p145 = scmp.eq.s32.totalorder %s23, 1
      %p146 = scmp.ne.s32.totalorder %s141, %s143
      %p147 = scmp.eq.s32.totalorder %s23, 0
      %p148 = por %p146, %p147
      %p149 = scmp.ne.s32.totalorder %s141, %s143
      %p150 = scmp.eq.s32.totalorder %s28, 1
      %p151 = por %p149, %p150
      %p152 = scmp.ne.s32.totalorder %s143, %s144
      %p153 = scmp.eq.s32.totalorder %s28, 0
      %p154 = por %p152, %p153
      %p155 = scmp.ne.s32.totalorder %s143, %s144
      %p156 = scmp.eq.s32.totalorder %s29, 1
      %p157 = por %p155, %p156
      %p159 = scmp.ne.s32.totalorder %s144, %s158
      %p160 = scmp.eq.s32.totalorder %s29, 0
      %p161 = por %p159, %p160
      %s163 = sadd.s32 %s162, 1
      %p166 = scmp.eq.s32.totalorder %s23, 1
      %p167 = scmp.ne.s32.totalorder %s162, %s164
      %p168 = scmp.eq.s32.totalorder %s23, 0
      %p169 = por %p167, %p168
      %p170 = scmp.ne.s32.totalorder %s162, %s164
      %p171 = scmp.eq.s32.totalorder %s28, 1
      %p172 = por %p170, %p171
      %p173 = scmp.ne.s32.totalorder %s164, %s165
      %p174 = scmp.eq.s32.totalorder %s28, 0
      %p175 = por %p173, %p174
      %p176 = scmp.ne.s32.totalorder %s164, %s165
      %p177 = scmp.eq.s32.totalorder %s29, 1
      %p178 = por %p176, %p177
      %p180 = scmp.ne.s32.totalorder %s165, %s179
      %p181 = scmp.eq.s32.totalorder %s29, 0
      %p182 = por %p180, %p181
      %s183 = ssub.s32 %s23, %s30
      %p184 = scmp.eq.s32.totalorder %s183, 0
      %s186 = sadd.s32 %s185, 1
      %s187 = scalar_select %p184, %s185, %s186
      %p190 = pneg %p184
      %p191 = scmp.eq.s32.totalorder %s23, 1
      %p192 = por %p190, %p191
      %p193 = scmp.ne.s32.totalorder %s185, %s188
      %p194 = scmp.eq.s32.totalorder %s23, 0
      %p195 = por %p193, %p194
      %p196 = scmp.ne.s32.totalorder %s185, %s188
      %p197 = scmp.eq.s32.totalorder %s28, 1
      %p198 = por %p196, %p197
      %p199 = scmp.ne.s32.totalorder %s188, %s189
      %p200 = scmp.eq.s32.totalorder %s28, 0
      %p201 = por %p199, %p200
      %p202 = scmp.ne.s32.totalorder %s188, %s189
      %p203 = scmp.eq.s32.totalorder %s29, 1
      %p204 = por %p202, %p203
      %p206 = scmp.ne.s32.totalorder %s189, %s205
      %p207 = scmp.eq.s32.totalorder %s29, 0
      %p208 = por %p206, %p207
      %s209 = ssub.s32 %s23, %s30
      %p210 = scmp.eq.s32.totalorder %s209, 0
      %s212 = sadd.s32 %s211, 1
      %s213 = scalar_select %p210, %s211, %s212
      %p216 = pneg %p210
      %p217 = scmp.eq.s32.totalorder %s23, 1
      %p218 = por %p216, %p217
      %p219 = scmp.ne.s32.totalorder %s211, %s214
      %p220 = scmp.eq.s32.totalorder %s23, 0
      %p221 = por %p219, %p220
      %p222 = scmp.ne.s32.totalorder %s211, %s214
      %p223 = scmp.eq.s32.totalorder %s28, 1
      %p224 = por %p222, %p223
      %p225 = scmp.ne.s32.totalorder %s214, %s215
      %p226 = scmp.eq.s32.totalorder %s28, 0
      %p227 = por %p225, %p226
      %p228 = scmp.ne.s32.totalorder %s214, %s215
      %p229 = scmp.eq.s32.totalorder %s29, 1
      %p230 = por %p228, %p229
      %p232 = scmp.ne.s32.totalorder %s215, %s231
      %p233 = scmp.eq.s32.totalorder %s29, 0
      %p234 = por %p232, %p233
      %s235 = ssub.s32 %s23, %s30
      %p236 = scmp.eq.s32.totalorder %s235, 0
      %s238 = sadd.s32 %s237, 1
      %s239 = scalar_select %p236, %s237, %s238
      %p242 = pneg %p236
      %p243 = scmp.eq.s32.totalorder %s23, 1
      %p244 = por %p242, %p243
      %p245 = scmp.ne.s32.totalorder %s237, %s240
      %p246 = scmp.eq.s32.totalorder %s23, 0
      %p247 = por %p245, %p246
      %p248 = scmp.ne.s32.totalorder %s237, %s240
      %p249 = scmp.eq.s32.totalorder %s28, 1
      %p250 = por %p248, %p249
      %p251 = scmp.ne.s32.totalorder %s240, %s241
      %p252 = scmp.eq.s32.totalorder %s28, 0
      %p253 = por %p251, %p252
      %p254 = scmp.ne.s32.totalorder %s240, %s241
      %p255 = scmp.eq.s32.totalorder %s29, 1
      %p256 = por %p254, %p255
      %p258 = scmp.ne.s32.totalorder %s241, %s257
      %p259 = scmp.eq.s32.totalorder %s29, 0
      %p260 = por %p258, %p259
      %p261 = scmp.le.s32.totalorder 1, %s23
      %p262 = scmp.lt.s32.totalorder %s23, 3
      %p263 = pnand %p261, %p262
      %p264 = pneg %p263
      // Predicated region
      $region9: #{tpu_custom_call.1} parent=5 // pred_check
        _
      $region10: #{tpu_custom_call.1} parent=5 // pred_check_branch
        %266 = sbr.rel (%p263) target = $region12
      $region11: #{tpu_custom_call.1} parent=5 // pred_region
        %s267 = ssub.s32 %s23, 1
        // Predicated region
        $region13: #{tpu_custom_call.1} parent=11 // pred_check
          %p268 = pneg %p70
        $region14: #{tpu_custom_call.1} parent=11 // pred_check_branch
          %270 = sbr.rel (%p268) target = $region16
        $region15: #{tpu_custom_call.1} parent=11 // pred_region
          _
        $region16: #{tpu_custom_call.1} parent=11 // pred_fallthru
          _
        // Predicated region
        $region17: #{tpu_custom_call.1} parent=11 // pred_check
          %p271 = pneg %p91
        $region18: #{tpu_custom_call.1} parent=11 // pred_check_branch
          %273 = sbr.rel (%p271) target = $region20
        $region19: #{tpu_custom_call.1} parent=11 // pred_region
          _
        $region20: #{tpu_custom_call.1} parent=11 // pred_fallthru
          _
        // Predicated region
        $region21: #{tpu_custom_call.1} parent=11 // pred_check
          %p274 = pneg %p112
        $region22: #{tpu_custom_call.1} parent=11 // pred_check_branch
          %276 = sbr.rel (%p274) target = $region24
        $region23: #{tpu_custom_call.1} parent=11 // pred_region
          _
        $region24: #{tpu_custom_call.1} parent=11 // pred_fallthru
          _
        // Predicated region
        $region25: #{tpu_custom_call.1} parent=11 // pred_check
          %p277 = pneg %p133
        $region26: #{tpu_custom_call.1} parent=11 // pred_check_branch
          %279 = sbr.rel (%p277) target = $region28
        $region27: #{tpu_custom_call.1} parent=11 // pred_region
          _
        $region28: #{tpu_custom_call.1} parent=11 // pred_fallthru
          _
        // Predicated region
        $region29: #{tpu_custom_call.1} parent=11 // pred_check
          %p280 = pneg %p154
        $region30: #{tpu_custom_call.1} parent=11 // pred_check_branch
          %282 = sbr.rel (%p280) target = $region32
        $region31: #{tpu_custom_call.1} parent=11 // pred_region
          %s284 = ssub.s32 3072, 3072
          %285 = vsyncadd [#allocation3], %s284
          %s286 = sshll.u32 [#allocation2], 4
          %s287 = int_to_ptr.vmem [resolvable:$true] %s286
          %292 = dma.hbm_to_vmem [thread:$0]  %s5, 3072, %s287, [#allocation3], 192, 192, 12
        $region32: #{tpu_custom_call.1} parent=11 // pred_fallthru
          _
        // Predicated region
        $region33: #{tpu_custom_call.1} parent=11 // pred_check
          %p293 = pneg %p175
        $region34: #{tpu_custom_call.1} parent=11 // pred_check_branch
          %295 = sbr.rel (%p293) target = $region36
        $region35: #{tpu_custom_call.1} parent=11 // pred_region
          _
        $region36: #{tpu_custom_call.1} parent=11 // pred_fallthru
          _
      $region12: #{tpu_custom_call.1} parent=5 // pred_fallthru
        _
      %p296 = scmp.lt.s32.totalorder %s23, 2
      // Predicated region
      $region37: #{tpu_custom_call.1} parent=5 // pred_check
        %p297 = pneg %p296
      $region38: #{tpu_custom_call.1} parent=5 // pred_check_branch
        %299 = sbr.rel (%p297) target = $region40
      $region39: #{tpu_custom_call.1} parent=5 // pred_region
        // Predicated region
        $region41: #{tpu_custom_call.1} parent=39 // pred_check
          %p300 = pneg %p43
        $region42: #{tpu_custom_call.1} parent=39 // pred_check_branch
          %302 = sbr.rel (%p300) target = $region44
        $region43: #{tpu_custom_call.1} parent=39 // pred_region
          %p303 = scmp.lt.s32.totalorder %s23, 1
          %s304 = scalar_select %p303, %s23, 1
          %s305 = smul.addr %s304, 8
          %s306 = smul.addr %s305, 8
          %s307 = scalar_lea.vmem %s0, %s306
        $region44: #{tpu_custom_call.1} parent=39 // pred_fallthru
          _
      $region40: #{tpu_custom_call.1} parent=5 // pred_fallthru
        _
      %p308 = scmp.le.s32.totalorder 1, %s23
      %p309 = scmp.lt.s32.totalorder %s23, 3
      %p310 = pnand %p308, %p309
      %p311 = pneg %p310
      // Predicated region
      $region45: #{tpu_custom_call.1} parent=5 // pred_check
        _
      $region46: #{tpu_custom_call.1} parent=5 // pred_check_branch
        %313 = sbr.rel (%p310) target = $region48
      $region47: #{tpu_custom_call.1} parent=5 // pred_region
        %s314 = ssub.s32 %s23, 1
        // Predicated region
        $region49: #{tpu_custom_call.1} parent=47 // pred_check
          %p315 = pneg %p154
        $region50: #{tpu_custom_call.1} parent=47 // pred_check_branch
          %317 = sbr.rel (%p315) target = $region52
        $region51: #{tpu_custom_call.1} parent=47 // pred_region
          %318 = dma.done [#allocation3], 3072
        $region52: #{tpu_custom_call.1} parent=47 // pred_fallthru
          _
        %p319 = scmp.lt.s32.totalorder %s28, 1
        %s320 = scalar_select %p319, %s28, 1
        %s321 = smul.addr %s320, 8
        %s322 = smul.addr %s321, 8
        %s323 = scalar_lea.vmem %s0, %s322
        %p324 = pneg %p49
        %p325 = pneg %p46
        %p326 = pneg %p70
        %p327 = pneg %p67
        %p328 = pneg %p91
        %p329 = pneg %p88
        %p330 = pneg %p112
        %p331 = pneg %p109
        %p332 = pneg %p133
        %p333 = pneg %p130
        %p334 = pneg %p154
        %p335 = pneg %p151
        %p336 = pneg %p175
        %p337 = pneg %p172
        %p338 = pneg %p201
        %p339 = pneg %p198
        %s340 = sand.u32 %s188, 1
        %s341 = scalar_lea.sflag [#allocation4], %s340
        %s342 = sand.u32 %s188, 1
        %s343 = smul.addr %s342, 32
        %s344 = scalar_lea.vmem [#allocation5], %s343
        %p345 = pneg %p227
        %p346 = pneg %p224
        %s347 = sand.u32 %s28, 1
        %s348 = scalar_lea.sflag [#allocation7], %s347
        %s349 = sand.u32 %s214, 1
        %s350 = smul.addr %s349, 32
        %s351 = scalar_lea.vmem [#allocation6], %s350
        %p352 = pneg %p253
        %p353 = pneg %p250
        %s354 = sand.u32 %s28, 1
        %s355 = scalar_lea.sflag [#allocation7], %s354
        %s356 = sand.u32 %s240, 1
        %s357 = smul.addr %s356, 32
        %s358 = scalar_lea.vmem [#allocation8], %s357
        %p359 = scmp.lt.s32.totalorder %s28, 1
        %s360 = scalar_select %p359, %s28, 1
        %s361 = smul.addr %s360, 8
        %s362 = smul.addr %s361, 8
        %s363 = scalar_lea.vmem %s0, %s362
        %v365 = vld [vmem:[%s363] sm:$0xff]
        %v366 = vld [vmem:[%s363 + $0x8] sm:$0xff]
        %v367 = vld [vmem:[%s363 + $0x10] sm:$0xff]
        %v368 = vld [vmem:[%s363 + $0x18] sm:$0xff]
        %v369 = vld [vmem:[%s363 + $0x20] sm:$0xff]
        %v370 = vld [vmem:[%s363 + $0x28] sm:$0xff]
        %v371 = vld [vmem:[%s363 + $0x30] sm:$0xff]
        %v372 = vld [vmem:[%s363 + $0x38] sm:$0xff]
        %v373 = vadd.f32 %v365, %v366
        %v374 = vadd.f32 %v373, %v367
        %v375 = vadd.f32 %v374, %v368
        %v376 = vadd.f32 %v375, %v369
        %v377 = vadd.f32 %v376, %v370
        %v378 = vadd.f32 %v377, %v371
        %v379 = vadd.f32 %v378, %v372
        %v380 = vrot.slane %v379, 4
        %v381 = vadd.f32 %v379, %v380
        %v382 = vrot.slane %v381, 2
        %v383 = vadd.f32 %v381, %v382
        %v384 = vrot.slane %v383, 1
        %v385 = vadd.f32 %v383, %v384
        %v386 = vmul.f32 %v385, 0.015625
        %v387 = vld [vmem:[%s1] sm:$0xff]
        %v388 = vld [vmem:[%s1 + $0x8] sm:$0xff]
        %v389 = vld [vmem:[%s1 + $0x10] sm:$0xff]
        %v390 = vld [vmem:[%s1 + $0x18] sm:$0xff]
        %v391 = vld [vmem:[%s1 + $0x20] sm:$0xff]
        %v392 = vld [vmem:[%s1 + $0x28] sm:$0xff]
        %v393 = vld [vmem:[%s1 + $0x30] sm:$0xff]
        %v394 = vld [vmem:[%s1 + $0x38] sm:$0xff]
        %v395 = vld [vmem:[%s1 + $0x40] sm:$0xff]
        %v396 = vld [vmem:[%s1 + $0x48] sm:$0xff]
        %v397 = vld [vmem:[%s1 + $0x50] sm:$0xff]
        %v398 = vld [vmem:[%s1 + $0x58] sm:$0xff]
        %v399 = vld [vmem:[%s1 + $0x60] sm:$0xff]
        %v400 = vld [vmem:[%s1 + $0x68] sm:$0xff]
        %v401 = vld [vmem:[%s1 + $0x70] sm:$0xff]
        %v402 = vld [vmem:[%s1 + $0x78] sm:$0xff]
        %403 = vmatprep.subr.mxu0 0.0
        %404 = vmatpush1.msra.mxu0 %v387
        %405 = vmatprep.subr.mxu0 0.0
        %406 = vmatpush1.msra.mxu0 %v388
        %407 = vmatprep.subr.mxu0 0.0
        %408 = vmatpush1.msra.mxu0 %v389
        %409 = vmatprep.subr.mxu0 0.0
        %410 = vmatpush1.msra.mxu0 %v390
        %411 = vmatprep.subr.mxu0 0.0
        %412 = vmatpush1.msra.mxu0 %v391
        %413 = vmatprep.subr.mxu0 0.0
        %414 = vmatpush1.msra.mxu0 %v392
        %415 = vmatprep.subr.mxu0 0.0
        %416 = vmatpush1.msra.mxu0 %v393
        %417 = vmatprep.subr.mxu0 0.0
        %418 = vmatpush1.msra.mxu0 %v394
        %419 = vmatprep.subr.mxu0 0.0
        %420 = vmatpush1.msra.mxu0 %v395
        %421 = vmatprep.subr.mxu0 0.0
        %422 = vmatpush1.msra.mxu0 %v396
        %423 = vmatprep.subr.mxu0 0.0
        %424 = vmatpush1.msra.mxu0 %v397
        %425 = vmatprep.subr.mxu0 0.0
        %426 = vmatpush1.msra.mxu0 %v398
        %427 = vmatprep.subr.mxu0 0.0
        %428 = vmatpush1.msra.mxu0 %v399
        %429 = vmatprep.subr.mxu0 0.0
        %430 = vmatpush1.msra.mxu0 %v400
        %431 = vmatprep.subr.mxu0 0.0
        %432 = vmatpush1.msra.mxu0 %v401
        %433 = vmatprep.subr.mxu0 0.0
        %434 = vmatpush1.msra.mxu0 %v402
        %435 = vmatprep.subr.mxu0 0.0
        %436 = vmatpush1.msra.mxu0 0.0
        %437 = vmatprep.subr.mxu0 0.0
        %438 = vmatpush1.msra.mxu0 0.0
        %439 = vmatprep.subr.mxu0 0.0
        %440 = vmatpush1.msra.mxu0 0.0
        %441 = vmatprep.subr.mxu0 0.0
        %442 = vmatpush1.msra.mxu0 0.0
        %443 = vmatprep.subr.mxu0 0.0
        %444 = vmatpush1.msra.mxu0 0.0
        %445 = vmatprep.subr.mxu0 0.0
        %446 = vmatpush1.msra.mxu0 0.0
        %447 = vmatprep.subr.mxu0 0.0
        %448 = vmatpush1.msra.mxu0 0.0
        %449 = vmatprep.subr.mxu0 0.0
        %450 = vmatpush1.msra.mxu0 0.0
        %451 = vmatprep.subr.mxu0 0.0
        %452 = vmatpush1.msra.mxu0 0.0
        %453 = vmatprep.subr.mxu0 0.0
        %454 = vmatpush1.msra.mxu0 0.0
        %455 = vmatprep.subr.mxu0 0.0
        %456 = vmatpush1.msra.mxu0 0.0
        %457 = vmatprep.subr.mxu0 0.0
        %458 = vmatpush1.msra.mxu0 0.0
        %459 = vmatprep.subr.mxu0 0.0
        %460 = vmatpush1.msra.mxu0 0.0
        %461 = vmatprep.subr.mxu0 0.0
        %462 = vmatpush1.msra.mxu0 0.0
        %463 = vmatprep.subr.mxu0 0.0
        %464 = vmatpush1.msra.mxu0 0.0
        %465 = vmatprep.subr.mxu0 0.0
        %466 = vmatpush1.msra.mxu0 0.0
        %467 = vmatprep.mubr.f32.mxu0 0.0
        %468 = vmatmul.mubr.f32.gmra.mrb[0].mxu0 %v386
        %v469 = vpop.f32.mrb[0].mxu0
        %v470 = vadd.f32 0.0, %v469
        %v471 = vpop.f32.mrb[0].mxu0
        %472 = vdwg.mxu0
        %v473 = vld [vmem:[%s2] sm:$0xff]
        %v474 = vld [vmem:[%s2 + $0x8] sm:$0xff]
        %v475 = vld [vmem:[%s2 + $0x10] sm:$0xff]
        %v476 = vld [vmem:[%s2 + $0x18] sm:$0xff]
        %vm477 = vcmask 261120
        %v479 = vsel %vm477, %v470, 0
        %481 = vmatprep.subr.mxu0 0.0
        %482 = vmatpush1.msra.mxu0 %v473
        %483 = vmatprep.subr.mxu0 0.0
        %484 = vmatpush1.msra.mxu0 %v474
        %485 = vmatprep.subr.mxu0 0.0
        %486 = vmatpush1.msra.mxu0 %v475
        %487 = vmatprep.subr.mxu0 0.0
        %488 = vmatpush1.msra.mxu0 %v476
        %489 = vmatprep.subr.mxu0 0.0
        %490 = vmatpush1.msra.mxu0 0.0
        %491 = vmatprep.subr.mxu0 0.0
        %492 = vmatpush1.msra.mxu0 0.0
        %493 = vmatprep.subr.mxu0 0.0
        %494 = vmatpush1.msra.mxu0 0.0
        %495 = vmatprep.subr.mxu0 0.0
        %496 = vmatpush1.msra.mxu0 0.0
        %497 = vmatprep.subr.mxu0 0.0
        %498 = vmatpush1.msra.mxu0 0.0
        %499 = vmatprep.subr.mxu0 0.0
        %500 = vmatpush1.msra.mxu0 0.0
        %501 = vmatprep.subr.mxu0 0.0
        %502 = vmatpush1.msra.mxu0 0.0
        %503 = vmatprep.subr.mxu0 0.0
        %504 = vmatpush1.msra.mxu0 0.0
        %505 = vmatprep.subr.mxu0 0.0
        %506 = vmatpush1.msra.mxu0 0.0
        %507 = vmatprep.subr.mxu0 0.0
        %508 = vmatpush1.msra.mxu0 0.0
        %509 = vmatprep.subr.mxu0 0.0
        %510 = vmatpush1.msra.mxu0 0.0
        %511 = vmatprep.subr.mxu0 0.0
        %512 = vmatpush1.msra.mxu0 0.0
        %513 = vmatprep.subr.mxu0 0.0
        %514 = vmatpush1.msra.mxu0 0.0
        %515 = vmatprep.subr.mxu0 0.0
        %516 = vmatpush1.msra.mxu0 0.0
        %517 = vmatprep.subr.mxu0 0.0
        %518 = vmatpush1.msra.mxu0 0.0
        %519 = vmatprep.subr.mxu0 0.0
        %520 = vmatpush1.msra.mxu0 0.0
        %521 = vmatprep.subr.mxu0 0.0
        %522 = vmatpush1.msra.mxu0 0.0
        %523 = vmatprep.subr.mxu0 0.0
        %524 = vmatpush1.msra.mxu0 0.0
        %525 = vmatprep.subr.mxu0 0.0
        %526 = vmatpush1.msra.mxu0 0.0
        %527 = vmatprep.subr.mxu0 0.0
        %528 = vmatpush1.msra.mxu0 0.0
        %529 = vmatprep.subr.mxu0 0.0
        %530 = vmatpush1.msra.mxu0 0.0
        %531 = vmatprep.subr.mxu0 0.0
        %532 = vmatpush1.msra.mxu0 0.0
        %533 = vmatprep.subr.mxu0 0.0
        %534 = vmatpush1.msra.mxu0 0.0
        %535 = vmatprep.subr.mxu0 0.0
        %536 = vmatpush1.msra.mxu0 0.0
        %537 = vmatprep.subr.mxu0 0.0
        %538 = vmatpush1.msra.mxu0 0.0
        %539 = vmatprep.subr.mxu0 0.0
        %540 = vmatpush1.msra.mxu0 0.0
        %541 = vmatprep.subr.mxu0 0.0
        %542 = vmatpush1.msra.mxu0 0.0
        %543 = vmatprep.subr.mxu0 0.0
        %544 = vmatpush1.msra.mxu0 0.0
        %545 = vmatprep.mubr.f32.mxu0 0.0
        %546 = vmatmul.mubr.f32.gmra.mrb[0].mxu0 %v479
        %v547 = vpop.f32.mrb[0].mxu0
        %v548 = vadd.f32 0.0, %v547
        %v549 = vpop.f32.mrb[0].mxu0
        %550 = vdwg.mxu0
        %v551 = vlaneseq
        %v552 = vshrl.u32 %v551, 7
        %v553 = vsub.s32 0, %v552
        %v554 = vrot.slane %v548, %v553
        %v555 = vsub.f32 %v365, %v554
        %v556 = vsub.f32 %v366, %v554
        %v557 = vsub.f32 %v367, %v554
        %v558 = vsub.f32 %v368, %v554
        %v559 = vsub.f32 %v369, %v554
        %v560 = vsub.f32 %v370, %v554
        %v561 = vsub.f32 %v371, %v554
        %v562 = vsub.f32 %v372, %v554
        %v563 = vmul.f32 %v555, %v555
        %v564 = vmul.f32 %v556, %v556
        %v565 = vmul.f32 %v557, %v557
        %v566 = vmul.f32 %v558, %v558
        %v567 = vmul.f32 %v559, %v559
        %v568 = vmul.f32 %v560, %v560
        %v569 = vmul.f32 %v561, %v561
        %v570 = vmul.f32 %v562, %v562
        %v571 = vadd.f32 %v563, %v564
        %v572 = vadd.f32 %v571, %v565
        %v573 = vadd.f32 %v572, %v566
        %v574 = vadd.f32 %v573, %v567
        %v575 = vadd.f32 %v574, %v568
        %v576 = vadd.f32 %v575, %v569
        %v577 = vadd.f32 %v576, %v570
        %v578 = vrot.slane %v577, 4
        %v579 = vadd.f32 %v577, %v578
        %v580 = vrot.slane %v579, 2
        %v581 = vadd.f32 %v579, %v580
        %v582 = vrot.slane %v581, 1
        %v583 = vadd.f32 %v581, %v582
        %v584 = vmul.f32 %v583, 0.015625
        %585 = vmatprep.subr.mxu0 0.0
        %586 = vmatpush1.msra.mxu0 %v387
        %587 = vmatprep.subr.mxu0 0.0
        %588 = vmatpush1.msra.mxu0 %v388
        %589 = vmatprep.subr.mxu0 0.0
        %590 = vmatpush1.msra.mxu0 %v389
        %591 = vmatprep.subr.mxu0 0.0
        %592 = vmatpush1.msra.mxu0 %v390
        %593 = vmatprep.subr.mxu0 0.0
        %594 = vmatpush1.msra.mxu0 %v391
        %595 = vmatprep.subr.mxu0 0.0
        %596 = vmatpush1.msra.mxu0 %v392
        %597 = vmatprep.subr.mxu0 0.0
        %598 = vmatpush1.msra.mxu0 %v393
        %599 = vmatprep.subr.mxu0 0.0
        %600 = vmatpush1.msra.mxu0 %v394
        %601 = vmatprep.subr.mxu0 0.0
        %602 = vmatpush1.msra.mxu0 %v395
        %603 = vmatprep.subr.mxu0 0.0
        %604 = vmatpush1.msra.mxu0 %v396
        %605 = vmatprep.subr.mxu0 0.0
        %606 = vmatpush1.msra.mxu0 %v397
        %607 = vmatprep.subr.mxu0 0.0
        %608 = vmatpush1.msra.mxu0 %v398
        %609 = vmatprep.subr.mxu0 0.0
        %610 = vmatpush1.msra.mxu0 %v399
        %611 = vmatprep.subr.mxu0 0.0
        %612 = vmatpush1.msra.mxu0 %v400
        %613 = vmatprep.subr.mxu0 0.0
        %614 = vmatpush1.msra.mxu0 %v401
        %615 = vmatprep.subr.mxu0 0.0
        %616 = vmatpush1.msra.mxu0 %v402
        %617 = vmatprep.subr.mxu0 0.0
        %618 = vmatpush1.msra.mxu0 0.0
        %619 = vmatprep.subr.mxu0 0.0
        %620 = vmatpush1.msra.mxu0 0.0
        %621 = vmatprep.subr.mxu0 0.0
        %622 = vmatpush1.msra.mxu0 0.0
        %623 = vmatprep.subr.mxu0 0.0
        %624 = vmatpush1.msra.mxu0 0.0
        %625 = vmatprep.subr.mxu0 0.0
        %626 = vmatpush1.msra.mxu0 0.0
        %627 = vmatprep.subr.mxu0 0.0
        %628 = vmatpush1.msra.mxu0 0.0
        %629 = vmatprep.subr.mxu0 0.0
        %630 = vmatpush1.msra.mxu0 0.0
        %631 = vmatprep.subr.mxu0 0.0
        %632 = vmatpush1.msra.mxu0 0.0
        %633 = vmatprep.subr.mxu0 0.0
        %634 = vmatpush1.msra.mxu0 0.0
        %635 = vmatprep.subr.mxu0 0.0
        %636 = vmatpush1.msra.mxu0 0.0
        %637 = vmatprep.subr.mxu0 0.0
        %638 = vmatpush1.msra.mxu0 0.0
        %639 = vmatprep.subr.mxu0 0.0
        %640 = vmatpush1.msra.mxu0 0.0
        %641 = vmatprep.subr.mxu0 0.0
        %642 = vmatpush1.msra.mxu0 0.0
        %643 = vmatprep.subr.mxu0 0.0
        %644 = vmatpush1.msra.mxu0 0.0
        %645 = vmatprep.subr.mxu0 0.0
        %646 = vmatpush1.msra.mxu0 0.0
        %647 = vmatprep.subr.mxu0 0.0
        %648 = vmatpush1.msra.mxu0 0.0
        %649 = vmatprep.mubr.f32.mxu0 0.0
        %650 = vmatmul.mubr.f32.gmra.mrb[0].mxu0 %v584
        %v651 = vpop.f32.mrb[0].mxu0
        %v652 = vadd.f32 0.0, %v651
        %v653 = vpop.f32.mrb[0].mxu0
        %654 = vdwg.mxu0
        %v656 = vsel %vm477, %v652, 0
        %658 = vmatprep.subr.mxu0 0.0
        %659 = vmatpush1.msra.mxu0 %v473
        %660 = vmatprep.subr.mxu0 0.0
        %661 = vmatpush1.msra.mxu0 %v474
        %662 = vmatprep.subr.mxu0 0.0
        %663 = vmatpush1.msra.mxu0 %v475
        %664 = vmatprep.subr.mxu0 0.0
        %665 = vmatpush1.msra.mxu0 %v476
        %666 = vmatprep.subr.mxu0 0.0
        %667 = vmatpush1.msra.mxu0 0.0
        %668 = vmatprep.subr.mxu0 0.0
        %669 = vmatpush1.msra.mxu0 0.0
        %670 = vmatprep.subr.mxu0 0.0
        %671 = vmatpush1.msra.mxu0 0.0
        %672 = vmatprep.subr.mxu0 0.0
        %673 = vmatpush1.msra.mxu0 0.0
        %674 = vmatprep.subr.mxu0 0.0
        %675 = vmatpush1.msra.mxu0 0.0
        %676 = vmatprep.subr.mxu0 0.0
        %677 = vmatpush1.msra.mxu0 0.0
        %678 = vmatprep.subr.mxu0 0.0
        %679 = vmatpush1.msra.mxu0 0.0
        %680 = vmatprep.subr.mxu0 0.0
        %681 = vmatpush1.msra.mxu0 0.0
        %682 = vmatprep.subr.mxu0 0.0
        %683 = vmatpush1.msra.mxu0 0.0
        %684 = vmatprep.subr.mxu0 0.0
        %685 = vmatpush1.msra.mxu0 0.0
        %686 = vmatprep.subr.mxu0 0.0
        %687 = vmatpush1.msra.mxu0 0.0
        %688 = vmatprep.subr.mxu0 0.0
        %689 = vmatpush1.msra.mxu0 0.0
        %690 = vmatprep.subr.mxu0 0.0
        %691 = vmatpush1.msra.mxu0 0.0
        %692 = vmatprep.subr.mxu0 0.0
        %693 = vmatpush1.msra.mxu0 0.0
        %694 = vmatprep.subr.mxu0 0.0
        %695 = vmatpush1.msra.mxu0 0.0
        %696 = vmatprep.subr.mxu0 0.0
        %697 = vmatpush1.msra.mxu0 0.0
        %698 = vmatprep.subr.mxu0 0.0
        %699 = vmatpush1.msra.mxu0 0.0
        %700 = vmatprep.subr.mxu0 0.0
        %701 = vmatpush1.msra.mxu0 0.0
        %702 = vmatprep.subr.mxu0 0.0
        %703 = vmatpush1.msra.mxu0 0.0
        %704 = vmatprep.subr.mxu0 0.0
        %705 = vmatpush1.msra.mxu0 0.0
        %706 = vmatprep.subr.mxu0 0.0
        %707 = vmatpush1.msra.mxu0 0.0
        %708 = vmatprep.subr.mxu0 0.0
        %709 = vmatpush1.msra.mxu0 0.0
        %710 = vmatprep.subr.mxu0 0.0
        %711 = vmatpush1.msra.mxu0 0.0
        %712 = vmatprep.subr.mxu0 0.0
        %713 = vmatpush1.msra.mxu0 0.0
        %714 = vmatprep.subr.mxu0 0.0
        %715 = vmatpush1.msra.mxu0 0.0
        %716 = vmatprep.subr.mxu0 0.0
        %717 = vmatpush1.msra.mxu0 0.0
        %718 = vmatprep.subr.mxu0 0.0
        %719 = vmatpush1.msra.mxu0 0.0
        %720 = vmatprep.subr.mxu0 0.0
        %721 = vmatpush1.msra.mxu0 0.0
        %722 = vmatprep.mubr.f32.mxu0 0.0
        %723 = vmatmul.mubr.f32.gmra.mrb[0].mxu0 %v656
        %v724 = vpop.f32.mrb[0].mxu0
        %v725 = vadd.f32 1e-06, %v724
        %v726 = vpop.f32.mrb[0].mxu0
        %727 = vdwg.mxu0
        %v728 = vrsqrt.pop %v725
        %v729 = vlaneseq
        %v730 = vshrl.u32 %v729, 7
        %v731 = vsub.s32 0, %v730
        %v732 = vrot.slane %v728, %v731
        %v733 = vmul.f32 %v555, %v732
        %v734 = vmul.f32 %v556, %v732
        %v735 = vmul.f32 %v557, %v732
        %v736 = vmul.f32 %v558, %v732
        %v737 = vmul.f32 %v559, %v732
        %v738 = vmul.f32 %v560, %v732
        %v739 = vmul.f32 %v561, %v732
        %v740 = vmul.f32 %v562, %v732
        %v741 = vld [vmem:[%s3] sm:$0x1]
        %v743 = vlaneseq
        %v744 = vshrl.u32 %v743, 7
        %v745 = vsub.s32 0, %v744
        %v746 = vrot.slane %v741, %v745
        %v748 = vmul.f32 %v733, %v746
        %v749 = vmul.f32 %v734, %v746
        %v750 = vmul.f32 %v735, %v746
        %v751 = vmul.f32 %v736, %v746
        %v752 = vmul.f32 %v737, %v746
        %v753 = vmul.f32 %v738, %v746
        %v754 = vmul.f32 %v739, %v746
        %v755 = vmul.f32 %v740, %v746
        %v756 = vld [vmem:[%s4] sm:$0x1]
        %v758 = vlaneseq
        %v759 = vshrl.u32 %v758, 7
        %v760 = vsub.s32 0, %v759
        %v761 = vrot.slane %v756, %v760
        %v763 = vadd.f32 %v748, %v761
        %v764 = vadd.f32 %v749, %v761
        %v765 = vadd.f32 %v750, %v761
        %v766 = vadd.f32 %v751, %v761
        %v767 = vadd.f32 %v752, %v761
        %v768 = vadd.f32 %v753, %v761
        %v769 = vadd.f32 %v754, %v761
        %v770 = vadd.f32 %v755, %v761
        %v771 = vpack.c.bf16 %v764, %v763
        %v772 = vpack.c.bf16 %v766, %v765
        %v773 = vpack.c.bf16 %v768, %v767
        %v774 = vpack.c.bf16 %v770, %v769
        %v775 = vld [vmem:[#allocation2] sm:$0xff]
        %v776 = vld [vmem:[#allocation2 + $0x8] sm:$0xf]
        %v777 = vld [vmem:[#allocation2 + $0xc] sm:$0xff]
        %v778 = vld [vmem:[#allocation2 + $0x14] sm:$0xf]
        %v779 = vld [vmem:[#allocation2 + $0x18] sm:$0xff]
        %v780 = vld [vmem:[#allocation2 + $0x20] sm:$0xf]
        %v781 = vld [vmem:[#allocation2 + $0x24] sm:$0xff]
        %v782 = vld [vmem:[#allocation2 + $0x2c] sm:$0xf]
        %v783 = vld [vmem:[#allocation2 + $0x30] sm:$0xff]
        %v784 = vld [vmem:[#allocation2 + $0x38] sm:$0xf]
        %v785 = vld [vmem:[#allocation2 + $0x3c] sm:$0xff]
        %v786 = vld [vmem:[#allocation2 + $0x44] sm:$0xf]
        %v787 = vld [vmem:[#allocation2 + $0x48] sm:$0xff]
        %v788 = vld [vmem:[#allocation2 + $0x50] sm:$0xf]
        %v789 = vld [vmem:[#allocation2 + $0x54] sm:$0xff]
        %v790 = vld [vmem:[#allocation2 + $0x5c] sm:$0xf]
        %v791 = vld [vmem:[#allocation2 + $0x60] sm:$0xff]
        %v792 = vld [vmem:[#allocation2 + $0x68] sm:$0xf]
        %v793 = vld [vmem:[#allocation2 + $0x6c] sm:$0xff]
        %v794 = vld [vmem:[#allocation2 + $0x74] sm:$0xf]
        %v795 = vld [vmem:[#allocation2 + $0x78] sm:$0xff]
        %v796 = vld [vmem:[#allocation2 + $0x80] sm:$0xf]
        %v797 = vld [vmem:[#allocation2 + $0x84] sm:$0xff]
        %v798 = vld [vmem:[#allocation2 + $0x8c] sm:$0xf]
        %v799 = vld [vmem:[#allocation2 + $0x90] sm:$0xff]
        %v800 = vld [vmem:[#allocation2 + $0x98] sm:$0xf]
        %v801 = vld [vmem:[#allocation2 + $0x9c] sm:$0xff]
        %v802 = vld [vmem:[#allocation2 + $0xa4] sm:$0xf]
        %v803 = vld [vmem:[#allocation2 + $0xa8] sm:$0xff]
        %v804 = vld [vmem:[#allocation2 + $0xb0] sm:$0xf]
        %v805 = vld [vmem:[#allocation2 + $0xb4] sm:$0xff]
        %v806 = vld [vmem:[#allocation2 + $0xbc] sm:$0xf]
        %v807 = vld [vmem:[%s6] sm:$0x7]
        %v809 = vlaneseq
        %v810 = vshrl.u32 %v809, 7
        %v811 = vsub.s32 0, %v810
        %v812 = vrot.slane %v807, %v811
        %v813 = vlaneseq
        %v814 = vshrl.u32 %v813, 7
        %v815 = vsub.s32 1, %v814
        %v816 = vrot.slane %v807, %v815
        %v817 = vlaneseq
        %v818 = vshrl.u32 %v817, 7
        %v819 = vsub.s32 2, %v818
        %v820 = vrot.slane %v807, %v819
        %v856 = vunpack.c.l.b16 %v775
        %v857 = vunpack.c.h.b16 %v775
        %v858 = vunpack.c.l.b16 %v776
        %v859 = vunpack.c.l.b16 %v777
        %v860 = vunpack.c.h.b16 %v777
        %v861 = vunpack.c.l.b16 %v778
        %v862 = vunpack.c.l.b16 %v779
        %v863 = vunpack.c.h.b16 %v779
        %v864 = vunpack.c.l.b16 %v780
        %v865 = vunpack.c.l.b16 %v781
        %v866 = vunpack.c.h.b16 %v781
        %v867 = vunpack.c.l.b16 %v782
        %v868 = vunpack.c.l.b16 %v783
        %v869 = vunpack.c.h.b16 %v783
        %v870 = vunpack.c.l.b16 %v784
        %v871 = vunpack.c.l.b16 %v785
        %v872 = vunpack.c.h.b16 %v785
        %v873 = vunpack.c.l.b16 %v786
        %v874 = vunpack.c.l.b16 %v787
        %v875 = vunpack.c.h.b16 %v787
        %v876 = vunpack.c.l.b16 %v788
        %v877 = vunpack.c.l.b16 %v789
        %v878 = vunpack.c.h.b16 %v789
        %v879 = vunpack.c.l.b16 %v790
        %v880 = vunpack.c.l.b16 %v791
        %v881 = vunpack.c.h.b16 %v791
        %v882 = vunpack.c.l.b16 %v792
        %v883 = vunpack.c.l.b16 %v793
        %v884 = vunpack.c.h.b16 %v793
        %v885 = vunpack.c.l.b16 %v794
        %v886 = vunpack.c.l.b16 %v795
        %v887 = vunpack.c.h.b16 %v795
        %v888 = vunpack.c.l.b16 %v796
        %v889 = vunpack.c.l.b16 %v797
        %v890 = vunpack.c.h.b16 %v797
        %v891 = vunpack.c.l.b16 %v798
        %v892 = vunpack.c.l.b16 %v799
        %v893 = vunpack.c.h.b16 %v799
        %v894 = vunpack.c.l.b16 %v800
        %v895 = vunpack.c.l.b16 %v801
        %v896 = vunpack.c.h.b16 %v801
        %v897 = vunpack.c.l.b16 %v802
        %v898 = vunpack.c.l.b16 %v803
        %v899 = vunpack.c.h.b16 %v803
        %v900 = vunpack.c.l.b16 %v804
        %v901 = vunpack.c.l.b16 %v805
        %v902 = vunpack.c.h.b16 %v805
        %v903 = vunpack.c.l.b16 %v806
        %v904 = vpack.c.b16 %v859, %v856
        %v905 = vpack.c.b16 %v860, %v857
        %v906 = vpack.c.b16 %v861, %v858
        %v907 = vpack.c.b16 %v865, %v862
        %v908 = vpack.c.b16 %v866, %v863
        %v909 = vpack.c.b16 %v867, %v864
        %v910 = vpack.c.b16 %v871, %v868
        %v911 = vpack.c.b16 %v872, %v869
        %v912 = vpack.c.b16 %v873, %v870
        %v913 = vpack.c.b16 %v877, %v874
        %v914 = vpack.c.b16 %v878, %v875
        %v915 = vpack.c.b16 %v879, %v876
        %v916 = vpack.c.b16 %v883, %v880
        %v917 = vpack.c.b16 %v884, %v881
        %v918 = vpack.c.b16 %v885, %v882
        %v919 = vpack.c.b16 %v889, %v886
        %v920 = vpack.c.b16 %v890, %v887
        %v921 = vpack.c.b16 %v891, %v888
        %v922 = vpack.c.b16 %v895, %v892
        %v923 = vpack.c.b16 %v896, %v893
        %v924 = vpack.c.b16 %v897, %v894
        %v925 = vpack.c.b16 %v901, %v898
        %v926 = vpack.c.b16 %v902, %v899
        %v927 = vpack.c.b16 %v903, %v900
        %952 = vmatprep.subr.bf16.mxu0 %v905
        %953 = vmatpush1.bf16.msra.mxu0 %v904
        %954 = vmatprep.subr.bf16.mxu0 %v908
        %955 = vmatpush1.bf16.msra.mxu0 %v907
        %956 = vmatprep.subr.bf16.mxu0 %v911
        %957 = vmatpush1.bf16.msra.mxu0 %v910
        %958 = vmatprep.subr.bf16.mxu0 %v914
        %959 = vmatpush1.bf16.msra.mxu0 %v913
        %960 = vmatprep.subr.bf16.mxu0 %v917
        %961 = vmatpush1.bf16.msra.mxu0 %v916
        %962 = vmatprep.subr.bf16.mxu0 %v920
        %963 = vmatpush1.bf16.msra.mxu0 %v919
        %964 = vmatprep.subr.bf16.mxu0 %v923
        %965 = vmatpush1.bf16.msra.mxu0 %v922
        %966 = vmatprep.subr.bf16.mxu0 %v926
        %967 = vmatpush1.bf16.msra.mxu0 %v925
        %968 = vmatprep.subr.bf16.mxu0 0
        %969 = vmatpush1.bf16.msra.mxu0 0
        %970 = vmatprep.subr.bf16.mxu0 0
        %971 = vmatpush1.bf16.msra.mxu0 0
        %972 = vmatprep.subr.bf16.mxu0 0
        %973 = vmatpush1.bf16.msra.mxu0 0
        %974 = vmatprep.subr.bf16.mxu0 0
        %975 = vmatpush1.bf16.msra.mxu0 0
        %976 = vmatprep.subr.bf16.mxu0 0
        %977 = vmatpush1.bf16.msra.mxu0 0
        %978 = vmatprep.subr.bf16.mxu0 0
        %979 = vmatpush1.bf16.msra.mxu0 0
        %980 = vmatprep.subr.bf16.mxu0 0
        %981 = vmatpush1.bf16.msra.mxu0 0
        %982 = vmatprep.subr.bf16.mxu0 0
        %983 = vmatpush1.bf16.msra.mxu0 0
        %984 = vmatprep.mubr.bf16.mxu0 0
        %985 = vmatmul.mubr.bf16.gmra.mrb[0].mxu0 %v771
        %v986 = vpop.f32.mrb[0].mxu0
        %v987 = vadd.f32 %v812, %v986
        %v988 = vpop.f32.mrb[0].mxu0
        %v989 = vadd.f32 %v816, %v988
        %v990 = vpop.f32.mrb[0].mxu0
        %v991 = vadd.f32 %v812, %v990
        %v992 = vpop.f32.mrb[0].mxu0
        %v993 = vadd.f32 %v816, %v992
        %994 = vmatprep.mubr.bf16.mxu0 0
        %995 = vmatmul.mubr.bf16.gmra.mrb[0].mxu0 %v772
        %v996 = vpop.f32.mrb[0].mxu0
        %v997 = vadd.f32 %v812, %v996
        %v998 = vpop.f32.mrb[0].mxu0
        %v999 = vadd.f32 %v816, %v998
        %v1000 = vpop.f32.mrb[0].mxu0
        %v1001 = vadd.f32 %v812, %v1000
        %v1002 = vpop.f32.mrb[0].mxu0
        %v1003 = vadd.f32 %v816, %v1002
        %1004 = vmatprep.mubr.bf16.mxu0 0
        %1005 = vmatmul.mubr.bf16.gmra.mrb[0].mxu0 %v773
        %v1006 = vpop.f32.mrb[0].mxu0
        %v1007 = vadd.f32 %v812, %v1006
        %v1008 = vpop.f32.mrb[0].mxu0
        %v1009 = vadd.f32 %v816, %v1008
        %v1010 = vpop.f32.mrb[0].mxu0
        %v1011 = vadd.f32 %v812, %v1010
        %v1012 = vpop.f32.mrb[0].mxu0
        %v1013 = vadd.f32 %v816, %v1012
        %1014 = vmatprep.mubr.bf16.mxu0 0
        %1015 = vmatmul.mubr.bf16.gmra.mrb[0].mxu0 %v774
        %v1016 = vpop.f32.mrb[0].mxu0
        %v1017 = vadd.f32 %v812, %v1016
        %v1018 = vpop.f32.mrb[0].mxu0
        %v1019 = vadd.f32 %v816, %v1018
        %v1020 = vpop.f32.mrb[0].mxu0
        %v1021 = vadd.f32 %v812, %v1020
        %v1022 = vpop.f32.mrb[0].mxu0
        %v1023 = vadd.f32 %v816, %v1022
        %1024 = vdwg.mxu0
        %1025 = vmatprep.subr.bf16.mxu0 0
        %1026 = vmatpush1.bf16.msra.mxu0 %v906
        %1027 = vmatprep.subr.bf16.mxu0 0
        %1028 = vmatpush1.bf16.msra.mxu0 %v909
        %1029 = vmatprep.subr.bf16.mxu0 0
        %1030 = vmatpush1.bf16.msra.mxu0 %v912
        %1031 = vmatprep.subr.bf16.mxu0 0
        %1032 = vmatpush1.bf16.msra.mxu0 %v915
        %1033 = vmatprep.subr.bf16.mxu0 0
        %1034 = vmatpush1.bf16.msra.mxu0 %v918
        %1035 = vmatprep.subr.bf16.mxu0 0
        %1036 = vmatpush1.bf16.msra.mxu0 %v921
        %1037 = vmatprep.subr.bf16.mxu0 0
        %1038 = vmatpush1.bf16.msra.mxu0 %v924
        %1039 = vmatprep.subr.bf16.mxu0 0
        %1040 = vmatpush1.bf16.msra.mxu0 %v927
        %1041 = vmatprep.subr.bf16.mxu0 0
        %1042 = vmatpush1.bf16.msra.mxu0 0
        %1043 = vmatprep.subr.bf16.mxu0 0
        %1044 = vmatpush1.bf16.msra.mxu0 0
        %1045 = vmatprep.subr.bf16.mxu0 0
        %1046 = vmatpush1.bf16.msra.mxu0 0
        %1047 = vmatprep.subr.bf16.mxu0 0
        %1048 = vmatpush1.bf16.msra.mxu0 0
        %1049 = vmatprep.subr.bf16.mxu0 0
        %1050 = vmatpush1.bf16.msra.mxu0 0
        %1051 = vmatprep.subr.bf16.mxu0 0
        %1052 = vmatpush1.bf16.msra.mxu0 0
        %1053 = vmatprep.subr.bf16.mxu0 0
        %1054 = vmatpush1.bf16.msra.mxu0 0
        %1055 = vmatprep.subr.bf16.mxu0 0
        %1056 = vmatpush1.bf16.msra.mxu0 0
        %1057 = vmatprep.mubr.bf16.mxu0 0
        %1058 = vmatmul.mubr.bf16.gmra.mrb[0].mxu0 %v771
        %v1059 = vpop.f32.mrb[0].mxu0
        %v1060 = vadd.f32 %v820, %v1059
        %v1061 = vpop.f32.mrb[0].mxu0
        %v1062 = vpop.f32.mrb[0].mxu0
        %v1063 = vadd.f32 %v820, %v1062
        %v1064 = vpop.f32.mrb[0].mxu0
        %1065 = vmatprep.mubr.bf16.mxu0 0
        %1066 = vmatmul.mubr.bf16.gmra.mrb[0].mxu0 %v772
        %v1067 = vpop.f32.mrb[0].mxu0
        %v1068 = vadd.f32 %v820, %v1067
        %v1069 = vpop.f32.mrb[0].mxu0
        %v1070 = vpop.f32.mrb[0].mxu0
        %v1071 = vadd.f32 %v820, %v1070
        %v1072 = vpop.f32.mrb[0].mxu0
        %1073 = vmatprep.mubr.bf16.mxu0 0
        %1074 = vmatmul.mubr.bf16.gmra.mrb[0].mxu0 %v773
        %v1075 = vpop.f32.mrb[0].mxu0
        %v1076 = vadd.f32 %v820, %v1075
        %v1077 = vpop.f32.mrb[0].mxu0
        %v1078 = vpop.f32.mrb[0].mxu0
        %v1079 = vadd.f32 %v820, %v1078
        %v1080 = vpop.f32.mrb[0].mxu0
        %1081 = vmatprep.mubr.bf16.mxu0 0
        %1082 = vmatmul.mubr.bf16.gmra.mrb[0].mxu0 %v774
        %v1083 = vpop.f32.mrb[0].mxu0
        %v1084 = vadd.f32 %v820, %v1083
        %v1085 = vpop.f32.mrb[0].mxu0
        %v1086 = vpop.f32.mrb[0].mxu0
        %v1087 = vadd.f32 %v820, %v1086
        %v1088 = vpop.f32.mrb[0].mxu0
        %1089 = vdwg.mxu0
        %v1090 = vpack.c.bf16 %v991, %v987
        %v1091 = vpack.c.bf16 %v1001, %v997
        %v1092 = vpack.c.bf16 %v1011, %v1007
        %v1093 = vpack.c.bf16 %v1021, %v1017
        %v1098 = vunpack.c.l.b16 %v1090
        %v1099 = vunpack.c.h.b16 %v1090
        %v1100 = vunpack.c.l.b16 %v1091
        %v1101 = vunpack.c.h.b16 %v1091
        %v1102 = vunpack.c.l.b16 %v1092
        %v1103 = vunpack.c.h.b16 %v1092
        %v1104 = vunpack.c.l.b16 %v1093
        %v1105 = vunpack.c.h.b16 %v1093
        %v1106 = vpack.c.b16 %v1098, %v1098
        %v1107 = vpack.c.b16 %v1099, %v1099
        %v1108 = vpack.c.b16 %v1100, %v1100
        %v1109 = vpack.c.b16 %v1101, %v1101
        %v1110 = vpack.c.b16 %v1102, %v1102
        %v1111 = vpack.c.b16 %v1103, %v1103
        %v1112 = vpack.c.b16 %v1104, %v1104
        %v1113 = vpack.c.b16 %v1105, %v1105
        %1122 = vst [vmem:[%s344] sm:$0xf] %v1106
        %1123 = vst [vmem:[%s344 + $0x4] sm:$0xf] %v1107
        %1124 = vst [vmem:[%s344 + $0x8] sm:$0xf] %v1108
        %1125 = vst [vmem:[%s344 + $0xc] sm:$0xf] %v1109
        %1126 = vst [vmem:[%s344 + $0x10] sm:$0xf] %v1110
        %1127 = vst [vmem:[%s344 + $0x14] sm:$0xf] %v1111
        %1128 = vst [vmem:[%s344 + $0x18] sm:$0xf] %v1112
        %1129 = vst [vmem:[%s344 + $0x1c] sm:$0xf] %v1113
        %v1130 = vpack.c.bf16 %v993, %v989
        %v1131 = vpack.c.bf16 %v1003, %v999
        %v1132 = vpack.c.bf16 %v1013, %v1009
        %v1133 = vpack.c.bf16 %v1023, %v1019
        %v1138 = vunpack.c.l.b16 %v1130
        %v1139 = vunpack.c.h.b16 %v1130
        %v1140 = vunpack.c.l.b16 %v1131
        %v1141 = vunpack.c.h.b16 %v1131
        %v1142 = vunpack.c.l.b16 %v1132
        %v1143 = vunpack.c.h.b16 %v1132
        %v1144 = vunpack.c.l.b16 %v1133
        %v1145 = vunpack.c.h.b16 %v1133
        %v1146 = vpack.c.b16 %v1138, %v1138
        %v1147 = vpack.c.b16 %v1139, %v1139
        %v1148 = vpack.c.b16 %v1140, %v1140
        %v1149 = vpack.c.b16 %v1141, %v1141
        %v1150 = vpack.c.b16 %v1142, %v1142
        %v1151 = vpack.c.b16 %v1143, %v1143
        %v1152 = vpack.c.b16 %v1144, %v1144
        %v1153 = vpack.c.b16 %v1145, %v1145
        %1162 = vst [vmem:[%s351] sm:$0xf] %v1146
        %1163 = vst [vmem:[%s351 + $0x4] sm:$0xf] %v1147
        %1164 = vst [vmem:[%s351 + $0x8] sm:$0xf] %v1148
        %1165 = vst [vmem:[%s351 + $0xc] sm:$0xf] %v1149
        %1166 = vst [vmem:[%s351 + $0x10] sm:$0xf] %v1150
        %1167 = vst [vmem:[%s351 + $0x14] sm:$0xf] %v1151
        %1168 = vst [vmem:[%s351 + $0x18] sm:$0xf] %v1152
        %1169 = vst [vmem:[%s351 + $0x1c] sm:$0xf] %v1153
        %v1170 = vpack.c.bf16 %v1063, %v1060
        %v1171 = vpack.c.bf16 %v1071, %v1068
        %v1172 = vpack.c.bf16 %v1079, %v1076
        %v1173 = vpack.c.bf16 %v1087, %v1084
        %v1178 = vunpack.c.l.b16 %v1170
        %v1179 = vunpack.c.h.b16 %v1170
        %v1180 = vunpack.c.l.b16 %v1171
        %v1181 = vunpack.c.h.b16 %v1171
        %v1182 = vunpack.c.l.b16 %v1172
        %v1183 = vunpack.c.h.b16 %v1172
        %v1184 = vunpack.c.l.b16 %v1173
        %v1185 = vunpack.c.h.b16 %v1173
        %v1186 = vpack.c.b16 %v1178, %v1178
        %v1187 = vpack.c.b16 %v1179, %v1179
        %v1188 = vpack.c.b16 %v1180, %v1180
        %v1189 = vpack.c.b16 %v1181, %v1181
        %v1190 = vpack.c.b16 %v1182, %v1182
        %v1191 = vpack.c.b16 %v1183, %v1183
        %v1192 = vpack.c.b16 %v1184, %v1184
        %v1193 = vpack.c.b16 %v1185, %v1185
        %1202 = vst [vmem:[%s358] sm:$0xf] %v1186
        %1203 = vst [vmem:[%s358 + $0x4] sm:$0xf] %v1187
        %1204 = vst [vmem:[%s358 + $0x8] sm:$0xf] %v1188
        %1205 = vst [vmem:[%s358 + $0xc] sm:$0xf] %v1189
        %1206 = vst [vmem:[%s358 + $0x10] sm:$0xf] %v1190
        %1207 = vst [vmem:[%s358 + $0x14] sm:$0xf] %v1191
        %1208 = vst [vmem:[%s358 + $0x18] sm:$0xf] %v1192
        %1209 = vst [vmem:[%s358 + $0x1c] sm:$0xf] %v1193
        %s1210 = sand.u32 %s188, 1
        %s1211 = scalar_lea.sflag [#allocation4], %s1210
        %s1212 = sand.u32 %s188, 1
        %s1213 = smul.addr %s1212, 32
        %s1214 = scalar_lea.vmem [#allocation5], %s1213
        %s1215 = sand.u32 %s28, 1
        %s1216 = scalar_lea.sflag [#allocation7], %s1215
        %s1217 = sand.u32 %s214, 1
        %s1218 = smul.addr %s1217, 32
        %s1219 = scalar_lea.vmem [#allocation6], %s1218
        %s1220 = sand.u32 %s28, 1
        %s1221 = scalar_lea.sflag [#allocation7], %s1220
        %s1222 = sand.u32 %s240, 1
        %s1223 = smul.addr %s1222, 32
        %s1224 = scalar_lea.vmem [#allocation8], %s1223
        // Predicated region
        $region53: #{tpu_custom_call.1} parent=47 // pred_check
          %p1225 = pneg %p198
        $region54: #{tpu_custom_call.1} parent=47 // pred_check_branch
          %1227 = sbr.rel (%p1225) target = $region56
        $region55: #{tpu_custom_call.1} parent=47 // pred_region
          %s1229 = ssub.s32 512, 512
          %1230 = vsyncadd %s1211, %s1229
          %s1231 = smul.addr %s28, 8
          %s1232 = smul.addr %s1231, 64
          %s1233 = scalar_lea.hbm %s7, %s1232
          %s1234 = sshll.u32 %s1214, 4
          %s1235 = int_to_ptr.vmem [resolvable:$true] %s1234
          %1240 = dma.vmem_to_hbm [thread:$0]  %s1235, 512, %s1233, %s1211, 64, 64, 4
        $region56: #{tpu_custom_call.1} parent=47 // pred_fallthru
          _
        // Predicated region
        $region57: #{tpu_custom_call.1} parent=47 // pred_check
          %p1241 = pneg %p224
        $region58: #{tpu_custom_call.1} parent=47 // pred_check_branch
          %1243 = sbr.rel (%p1241) target = $region60
        $region59: #{tpu_custom_call.1} parent=47 // pred_region
          %s1245 = ssub.s32 512, 512
          %1246 = vsyncadd %s1216, %s1245
          %s1247 = smul.addr %s28, 8
          %s1248 = smul.addr %s1247, 64
          %s1249 = scalar_lea.hbm %s8, %s1248
          %s1250 = sshll.u32 %s1219, 4
          %s1251 = int_to_ptr.vmem [resolvable:$true] %s1250
          %1256 = dma.vmem_to_hbm [thread:$0]  %s1251, 512, %s1249, %s1216, 64, 64, 4
        $region60: #{tpu_custom_call.1} parent=47 // pred_fallthru
          _
        // Predicated region
        $region61: #{tpu_custom_call.1} parent=47 // pred_check
          %p1257 = pneg %p250
        $region62: #{tpu_custom_call.1} parent=47 // pred_check_branch
          %1259 = sbr.rel (%p1257) target = $region64
        $region63: #{tpu_custom_call.1} parent=47 // pred_region
          %s1261 = ssub.s32 512, 512
          %1262 = vsyncadd %s1221, %s1261
          %s1263 = smul.addr %s28, 8
          %s1264 = smul.addr %s1263, 64
          %s1265 = scalar_lea.hbm %s9, %s1264
          %s1266 = sshll.u32 %s1224, 4
          %s1267 = int_to_ptr.vmem [resolvable:$true] %s1266
          %1272 = dma.vmem_to_hbm [thread:$0]  %s1267, 512, %s1265, %s1221, 64, 64, 4
        $region64: #{tpu_custom_call.1} parent=47 // pred_fallthru
          _
      $region48: #{tpu_custom_call.1} parent=5 // pred_fallthru
        _
      %p1273 = scmp.le.s32.totalorder 2, %s23
      // Predicated region
      $region65: #{tpu_custom_call.1} parent=5 // pred_check
        %p1274 = pneg %p1273
      $region66: #{tpu_custom_call.1} parent=5 // pred_check_branch
        %1276 = sbr.rel (%p1274) target = $region68
      $region67: #{tpu_custom_call.1} parent=5 // pred_region
        %s1277 = ssub.s32 %s23, 2
        // Predicated region
        $region69: #{tpu_custom_call.1} parent=67 // pred_check
          %p1278 = pneg %p204
        $region70: #{tpu_custom_call.1} parent=67 // pred_check_branch
          %1280 = sbr.rel (%p1278) target = $region72
        $region71: #{tpu_custom_call.1} parent=67 // pred_region
          %s1281 = sand.u32 %s189, 1
          %s1282 = scalar_lea.sflag [#allocation4], %s1281
          %s1283 = sand.u32 %s189, 1
          %s1284 = smul.addr %s1283, 32
          %s1285 = scalar_lea.vmem [#allocation5], %s1284
          %1286 = dma.done %s1282, 512
        $region72: #{tpu_custom_call.1} parent=67 // pred_fallthru
          _
        // Predicated region
        $region73: #{tpu_custom_call.1} parent=67 // pred_check
          %p1287 = pneg %p230
        $region74: #{tpu_custom_call.1} parent=67 // pred_check_branch
          %1289 = sbr.rel (%p1287) target = $region76
        $region75: #{tpu_custom_call.1} parent=67 // pred_region
          %s1290 = sand.u32 %s29, 1
          %s1291 = scalar_lea.sflag [#allocation7], %s1290
          %s1292 = sand.u32 %s215, 1
          %s1293 = smul.addr %s1292, 32
          %s1294 = scalar_lea.vmem [#allocation6], %s1293
          %1295 = dma.done %s1291, 512
        $region76: #{tpu_custom_call.1} parent=67 // pred_fallthru
          _
        // Predicated region
        $region77: #{tpu_custom_call.1} parent=67 // pred_check
          %p1296 = pneg %p256
        $region78: #{tpu_custom_call.1} parent=67 // pred_check_branch
          %1298 = sbr.rel (%p1296) target = $region80
        $region79: #{tpu_custom_call.1} parent=67 // pred_region
          %s1299 = sand.u32 %s29, 1
          %s1300 = scalar_lea.sflag [#allocation7], %s1299
          %s1301 = sand.u32 %s241, 1
          %s1302 = smul.addr %s1301, 32
          %s1303 = scalar_lea.vmem [#allocation8], %s1302
          %1304 = dma.done %s1300, 512
        $region80: #{tpu_custom_call.1} parent=67 // pred_fallthru
          _
      $region68: #{tpu_custom_call.1} parent=5 // pred_fallthru
        _
    $region6: #{tpu_custom_call.1} parent=1 // loop_footer
      %s27 = sadd.s32 1, %s23
    $region7: #{tpu_custom_call.1} parent=1 // loop_footer_branch
      %22 = sbr.rel target = $region3
    $region8: #{tpu_custom_call.1} parent=1 // loop_exit
      _
    %1305 = vsyncpa [#allocation3], 1
    %s1306 = scalar_lea.sflag [#allocation3], 1
    %1307 = vsyncpa %s1306, 1
    %1308 = vsyncpa [#allocation4], 1
    %s1309 = scalar_lea.sflag [#allocation4], 1
    %1310 = vsyncpa %s1309, 1
    %1311 = vsyncpa [#allocation7], 1
    %s1312 = scalar_lea.sflag [#allocation7], 1
    %1313 = vsyncpa %s1312, 1

</llo_original>
